<compile_context>
chip_gen: v6e
topology: v6e:2x2x1
jax: 0.10.0
libtpu: 0.0.40
codegen_flags: <defaults>
</compile_context>

<pallas_src>
import math
import functools

import jax
import jax.numpy as jnp
from jax.experimental import pallas as pl
from jax.experimental.pallas import tpu as pltpu


NEG_INF = -1e30                       # finite mask value (avoid exp(-inf) NaNs)
VMEM_LIMIT = 48 * 1024 * 1024         # > 32 MiB default, < v7x 64 MiB physical


# ----------------------------- helpers --------------------------------------

def _pick_block(dim, target, align):
    """Largest divisor of `dim` that is <= target and a multiple of `align`,
    else the full dim (full-extent blocks are always layout-legal)."""
    if dim <= target:
        return dim
    best = 0
    mult = align
    while mult <= target:
        if dim % mult == 0:
            best = mult
        mult += align
    return best if best > 0 else dim


# ----------------------------- kernels --------------------------------------

def _matmul_kernel(x_ref, w_ref, b_ref, o_ref, acc_ref):
    """One (tm, tn) output tile; K axis is the innermost (arbitrary) grid dim."""
    k = pl.program_id(2)

    @pl.when(k == 0)
    def _():
        acc_ref[...] = jnp.zeros_like(acc_ref)

    # bf16 at the MXU boundary, f32 accumulation.
    acc_ref[...] += jnp.dot(x_ref[...].astype(jnp.bfloat16),
                            w_ref[...].astype(jnp.bfloat16),
                            preferred_element_type=jnp.float32)

    @pl.when(k == pl.num_programs(2) - 1)
    def _():
        o_ref[...] = (acc_ref[...] + b_ref[...]).astype(o_ref.dtype)


def _flash_attn_kernel(q_ref, k_ref, v_ref, o_ref, m_sc, l_sc, acc_sc,
                       *, scale, block_q, block_k):
    """Online-softmax causal attention for one (b, h, q-tile); KV tiles stream
    along the innermost grid axis."""
    qi = pl.program_id(2)
    ki = pl.program_id(3)

    @pl.when(ki == 0)
    def _():
        m_sc[...] = jnp.full_like(m_sc, NEG_INF)
        l_sc[...] = jnp.zeros_like(l_sc)
        acc_sc[...] = jnp.zeros_like(acc_sc)

    def process(apply_mask):
        # Scale folded into q (T x D multiply instead of T x T).
        q = (q_ref[...] * scale).astype(jnp.bfloat16)
        kk = k_ref[...].astype(jnp.bfloat16)
        # Contract last dims directly — no materialized K transpose.
        s = jax.lax.dot_general(
            q, kk, dimension_numbers=(((1,), (1,)), ((), ())),
            preferred_element_type=jnp.float32)               # (block_q, block_k)
        if apply_mask:  # only the diagonal block needs the element-wise mask
            row = qi * block_q + jax.lax.broadcasted_iota(jnp.int32, s.shape, 0)
            col = ki * block_k + jax.lax.broadcasted_iota(jnp.int32, s.shape, 1)
            s = jnp.where(row >= col, s, NEG_INF)

        m_prev = m_sc[...]
        m_new = jnp.maximum(m_prev, jnp.max(s, axis=-1, keepdims=True))
        alpha = jnp.exp(m_prev - m_new)
        p = jnp.exp(s - m_new)
        l_sc[...] = alpha * l_sc[...] + jnp.sum(p, axis=-1, keepdims=True)
        acc_sc[...] = alpha * acc_sc[...] + jnp.dot(
            p.astype(jnp.bfloat16), v_ref[...].astype(jnp.bfloat16),
            preferred_element_type=jnp.float32)
        m_sc[...] = m_new

    # Causal block classification (block_q == block_k enforced by wrapper):
    #   ki <  qi : fully unmasked block
    #   ki == qi : diagonal block (apply element mask)
    #   ki >  qi : fully masked -> skipped (no compute; DMA aliased by index_map)
    @pl.when(ki < qi)
    def _():
        process(apply_mask=False)

    @pl.when(ki == qi)
    def _():
        process(apply_mask=True)

    @pl.when(ki == pl.num_programs(3) - 1)
    def _():
        inv_l = pl.reciprocal(l_sc[...], approx=True)   # EUP slot, ~free
        o_ref[...] = (acc_sc[...] * inv_l).astype(o_ref.dtype)


# ----------------------------- wrappers -------------------------------------

def linear(x2d, w, b, *, bm=256, bn=256, bk=512):
    """x2d: (M, K), w: (K, N), b: (N,) -> (M, N). Tiled, pipelined matmul."""
    M, K = x2d.shape
    K2, N = w.shape
    assert K == K2 and b.shape == (N,)

    tm = _pick_block(M, bm, 8)     # sublane dim of x / out
    tn = _pick_block(N, bn, 128)   # lane dim of w / out
    tk = _pick_block(K, bk, 128)   # lane dim of x, sublane dim of w

    grid = (M // tm, N // tn, K // tk)

    cost = pl.CostEstimate(
        flops=2 * M * N * K,
        transcendentals=0,
        bytes_accessed=4 * (M * K + K * N + M * N + N),
    )

    return pl.pallas_call(
        _matmul_kernel,
        out_shape=jax.ShapeDtypeStruct((M, N), x2d.dtype),
        grid=grid,
        in_specs=[
            pl.BlockSpec((tm, tk), lambda i, j, k: (i, k)),
            pl.BlockSpec((tk, tn), lambda i, j, k: (k, j)),
            pl.BlockSpec((1, tn), lambda i, j, k: (0, j)),
        ],
        out_specs=pl.BlockSpec((tm, tn), lambda i, j, k: (i, j)),
        scratch_shapes=[pltpu.VMEM((tm, tn), jnp.float32)],
        compiler_params=pltpu.CompilerParams(
            dimension_semantics=("parallel", "parallel", "arbitrary"),
            vmem_limit_bytes=VMEM_LIMIT),
        cost_estimate=cost,
    )(x2d, w, b.reshape(1, N))


def causal_attention(q, k, v, *, block_q=128):
    """q, k, v: (B, H, T, D) -> (B, H, T, D). Flash-style causal attention."""
    B, H, T, D = q.shape
    bq = min(block_q, T)
    assert T % bq == 0, "T must be divisible by the attention block size"
    bk = bq                      # equal tiles -> diagonal block iff ki == qi
    nq, nk = T // bq, T // bk
    scale = 1.0 / math.sqrt(D)

    kernel = functools.partial(_flash_attn_kernel, scale=scale,
                               block_q=bq, block_k=bk)

    q_spec = pl.BlockSpec((None, None, bq, D),
                          lambda b, h, qi, ki: (b, h, qi, 0))
    # Clamp the KV block index so fully-masked (skipped) steps re-use the
    # previously fetched tile -> no extra K/V DMA traffic past the diagonal.
    kv_spec = pl.BlockSpec((None, None, bk, D),
                           lambda b, h, qi, ki: (b, h, jnp.minimum(ki, qi), 0))
    o_spec = pl.BlockSpec((None, None, bq, D),
                          lambda b, h, qi, ki: (b, h, qi, 0))

    cost = pl.CostEstimate(
        flops=2 * B * H * T * T * D,          # ~half of dense 4*B*H*T^2*D (causal)
        transcendentals=B * H * T * T // 2,
        bytes_accessed=4 * 4 * B * H * T * D,
    )

    return pl.pallas_call(
        kernel,
        out_shape=jax.ShapeDtypeStruct((B, H, T, D), q.dtype),
        grid=(B, H, nq, nk),
        in_specs=[q_spec, kv_spec, kv_spec],
        out_specs=o_spec,
        scratch_shapes=[
            pltpu.VMEM((bq, 1), jnp.float32),   # running max
            pltpu.VMEM((bq, 1), jnp.float32),   # running denominator
            pltpu.VMEM((bq, D), jnp.float32),   # f32 output accumulator
        ],
        compiler_params=pltpu.CompilerParams(
            dimension_semantics=("parallel", "parallel", "parallel", "arbitrary"),
            vmem_limit_bytes=VMEM_LIMIT),
        cost_estimate=cost,
    )(q, k, v)


def causal_self_attention(x, params, n_head, *, block_q=128,
                          mm_blocks=(256, 256, 512)):
    """Forward pass of CausalSelfAttention. x: (B, T, C) float32."""
    B, T, C = x.shape
    assert C % n_head == 0
    D = C // n_head
    bm, bn, bk = mm_blocks

    # qkv projection: (B*T, C) @ (C, 3C) + (3C,)
    qkv = linear(x.reshape(B * T, C), params["w_attn"], params["b_attn"],
                 bm=bm, bn=bn, bk=bk)

    # Head split to (B, H, T, D) — a single fused XLA transpose.
    # TODO(synk): folding this relayout into the attention BlockSpec index maps
    # needs head_dim to be a 128-lane multiple; with small head_dim the (8,128)
    # block constraints force an XLA-side transpose instead.
    qkv = qkv.reshape(B, T, 3, n_head, D).transpose(2, 0, 3, 1, 4)  # (3,B,H,T,D)
    q, k, v = qkv[0], qkv[1], qkv[2]

    y = causal_attention(q, k, v, block_q=block_q)        # (B, H, T, D)
    y = y.transpose(0, 2, 1, 3).reshape(B * T, C)

    # output projection (resid_dropout / attn_dropout: identity in eval mode)
    y = linear(y, params["w_proj"], params["b_proj"], bm=bm, bn=bn, bk=bk)
    return y.reshape(B, T, C)


# --------------------------- reference (pure JAX) ----------------------------

def reference(x, params, n_head):
    B, T, C = x.shape
    hd = C // n_head
    qkv = x @ params["w_attn"] + params["b_attn"]
    q, k, v = jnp.split(qkv, 3, axis=2)
    q = q.reshape(B, T, n_head, hd).transpose(0, 2, 1, 3)
    k = k.reshape(B, T, n_head, hd).transpose(0, 2, 1, 3)
    v = v.reshape(B, T, n_head, hd).transpose(0, 2, 1, 3)
    s = jnp.einsum("bhqd,bhkd->bhqk", q, k) / math.sqrt(hd)
    mask = jnp.tril(jnp.ones((T, T), bool))
    s = jnp.where(mask, s, -jnp.inf)
    p = jax.nn.softmax(s, axis=-1)
    y = jnp.einsum("bhqk,bhkd->bhqd", p, v)
    y = y.transpose(0, 2, 1, 3).reshape(B, T, C)
    return y @ params["w_proj"] + params["b_proj"]


# ------------------------------- main ----------------------------------------

if __name__ == "__main__":
    # config: n_embd=256, n_head=4 (head_dim=64), block_size>=T, bias=True, dropout=0.0
    B, T, C, n_head = 2, 16, 256, 4

    key = jax.random.PRNGKey(0)
    kx, k1, k2, k3, k4 = jax.random.split(key, 5)

    x = jax.random.normal(kx, (B, T, C), dtype=jnp.float32)
    params = {
        "w_attn": jax.random.normal(k1, (C, 3 * C), jnp.float32) * 0.02,
        "b_attn": jax.random.normal(k2, (3 * C,), jnp.float32) * 0.02,
        "w_proj": jax.random.normal(k3, (C, C), jnp.float32) * 0.02,
        "b_proj": jax.random.normal(k4, (C,), jnp.float32) * 0.02,
    }

    # Small blocks so the test exercises the matmul K-accumulation grid and the
    # multi-block causal flash path (diag-masked / unmasked / skipped tiles).
    fwd = jax.jit(functools.partial(causal_self_attention, n_head=n_head,
                                    block_q=8, mm_blocks=(256, 256, 128)))
    y = jax.block_until_ready(fwd(x, params))

    y_ref = reference(x, params, n_head)
    assert y.shape == (B, T, C)
    # bf16 MXU inputs (f32 accumulation) -> loosened tolerance vs pure-f32 ref.
    assert jnp.allclose(y, y_ref, atol=2e-2, rtol=2e-2), float(
        jnp.max(jnp.abs(y - y_ref)))

    print("KERNEL_OK")
</pallas_src>

<mosaic_0001>
module attributes {stable_mosaic.version = 11 : i64} {
  func.func @_matmul_kernel(%arg0: i32, %arg1: i32, %arg2: i32, %arg3: memref<32x128xf32, #tpu.memory_space<vmem>>, %arg4: memref<128x256xf32, #tpu.memory_space<vmem>>, %arg5: memref<1x256xf32, #tpu.memory_space<vmem>>, %arg6: memref<32x256xf32, #tpu.memory_space<vmem>>, %arg7: memref<32x256xf32, #tpu.memory_space<vmem>>) attributes {dimension_semantics = [#tpu.dimension_semantics<parallel>, #tpu.dimension_semantics<parallel>, #tpu.dimension_semantics<arbitrary>], iteration_bounds = array<i64: 1, 3, 2>, scalar_prefetch = 0 : i64, scratch_operands = 1 : i64, tpu.core_type = #tpu.core_type<tc>, window_params = [{transform_indices = @transform_0, window_bounds = array<i64: 32, 128>}, {transform_indices = @transform_1, window_bounds = array<i64: 128, 256>}, {transform_indices = @transform_2, window_bounds = array<i64: 1, 256>}, {transform_indices = @transform_3, window_bounds = array<i64: 32, 256>}]} {
    %c0_i32 = arith.constant 0 : i32
    %0 = arith.cmpi eq, %arg2, %c0_i32 : i32
    %1 = arith.extui %0 : i1 to i32
    %c0_i32_0 = arith.constant 0 : i32
    %2 = arith.cmpi ne, %1, %c0_i32_0 : i32
    scf.if %2 {
      %cst_9 = arith.constant 0.000000e+00 : f32
      %14 = vector.broadcast %cst_9 : f32 to vector<32x256xf32>
      %c0_10 = arith.constant 0 : index
      %c0_11 = arith.constant 0 : index
      %15 = vector.load %arg7[%c0_10, %c0_11] : memref<32x256xf32, #tpu.memory_space<vmem>>, vector<32x256xf32>
      tpu.vector_store %arg7[%c0_10, %c0_11], %14 {strides = array<i32>} : memref<32x256xf32, #tpu.memory_space<vmem>>, vector<32x256xf32>,
    } else {
    }
    %c0 = arith.constant 0 : index
    %c0_1 = arith.constant 0 : index
    %3 = vector.load %arg7[%c0, %c0_1] : memref<32x256xf32, #tpu.memory_space<vmem>>, vector<32x256xf32>
    %c0_2 = arith.constant 0 : index
    %c0_3 = arith.constant 0 : index
    %4 = vector.load %arg3[%c0_2, %c0_3] : memref<32x128xf32, #tpu.memory_space<vmem>>, vector<32x128xf32>
    %5 = arith.truncf %4 : vector<32x128xf32> to vector<32x128xbf16>
    %c0_4 = arith.constant 0 : index
    %c0_5 = arith.constant 0 : index
    %6 = vector.load %arg4[%c0_4, %c0_5] : memref<128x256xf32, #tpu.memory_space<vmem>>, vector<128x256xf32>
    %7 = arith.truncf %6 : vector<128x256xf32> to vector<128x256xbf16>
    %cst = arith.constant dense<0.000000e+00> : vector<32x256xf32>
    %8 = tpu.matmul %5, %7, %cst {dimension_numbers = #tpu.dot_dimension_numbers<[1], [0], [0], [1], [0, 0, 1, 1], [], []>} : vector<32x128xbf16>, vector<128x256xbf16>, vector<32x256xf32> -> vector<32x256xf32>
    %9 = arith.addf %3, %8 : vector<32x256xf32>
    %c0_6 = arith.constant 0 : index
    %c0_7 = arith.constant 0 : index
    %10 = vector.load %arg7[%c0_6, %c0_7] : memref<32x256xf32, #tpu.memory_space<vmem>>, vector<32x256xf32>
    tpu.vector_store %arg7[%c0_6, %c0_7], %9 {strides = array<i32>} : memref<32x256xf32, #tpu.memory_space<vmem>>, vector<32x256xf32>,
    %c1_i32 = arith.constant 1 : i32
    %11 = arith.cmpi eq, %arg2, %c1_i32 : i32
    %12 = arith.extui %11 : i1 to i32
    %c0_i32_8 = arith.constant 0 : i32
    %13 = arith.cmpi ne, %12, %c0_i32_8 : i32
    scf.if %13 {
      %c0_9 = arith.constant 0 : index
      %c0_10 = arith.constant 0 : index
      %14 = vector.load %arg7[%c0_9, %c0_10] : memref<32x256xf32, #tpu.memory_space<vmem>>, vector<32x256xf32>
      %c0_11 = arith.constant 0 : index
      %c0_12 = arith.constant 0 : index
      %15 = vector.load %arg5[%c0_11, %c0_12] : memref<1x256xf32, #tpu.memory_space<vmem>>, vector<1x256xf32>
      %16 = vector.broadcast %15 : vector<1x256xf32> to vector<32x256xf32>
      %17 = arith.addf %14, %16 : vector<32x256xf32>
      %c0_13 = arith.constant 0 : index
      %c0_14 = arith.constant 0 : index
      %18 = vector.load %arg6[%c0_13, %c0_14] : memref<32x256xf32, #tpu.memory_space<vmem>>, vector<32x256xf32>
      tpu.vector_store %arg6[%c0_13, %c0_14], %17 {strides = array<i32>} : memref<32x256xf32, #tpu.memory_space<vmem>>, vector<32x256xf32>,
    } else {
    }
    return
  }
  func.func @transform_0(%arg0: i32, %arg1: i32, %arg2: i32) -> (i32, i32) {
    %c0_i32 = arith.constant 0 : i32
    return %arg0, %arg2 : i32, i32
  }
  func.func @transform_1(%arg0: i32, %arg1: i32, %arg2: i32) -> (i32, i32) {
    %c0_i32 = arith.constant 0 : i32
    return %arg2, %arg1 : i32, i32
  }
  func.func @transform_2(%arg0: i32, %arg1: i32, %arg2: i32) -> (i32, i32) {
    %c0_i32 = arith.constant 0 : i32
    %c0_i32_0 = arith.constant 0 : i32
    return %c0_i32, %arg1 : i32, i32
  }
  func.func @transform_3(%arg0: i32, %arg1: i32, %arg2: i32) -> (i32, i32) {
    %c0_i32 = arith.constant 0 : i32
    return %arg0, %arg1 : i32, i32
  }
}

module attributes {stable_mosaic.version = 11 : i64} {
  func.func @_matmul_kernel(%arg0: i32, %arg1: i32, %arg2: i32, %arg3: memref<32x128xf32, #tpu.memory_space<vmem>>, %arg4: memref<128x256xf32, #tpu.memory_space<vmem>>, %arg5: memref<1x256xf32, #tpu.memory_space<vmem>>, %arg6: memref<32x256xf32, #tpu.memory_space<vmem>>, %arg7: memref<32x256xf32, #tpu.memory_space<vmem>>) attributes {dimension_semantics = [#tpu.dimension_semantics<parallel>, #tpu.dimension_semantics<parallel>, #tpu.dimension_semantics<arbitrary>], iteration_bounds = array<i64: 1, 1, 2>, scalar_prefetch = 0 : i64, scratch_operands = 1 : i64, tpu.core_type = #tpu.core_type<tc>, window_params = [{transform_indices = @transform_0, window_bounds = array<i64: 32, 128>}, {transform_indices = @transform_1, window_bounds = array<i64: 128, 256>}, {transform_indices = @transform_2, window_bounds = array<i64: 1, 256>}, {transform_indices = @transform_3, window_bounds = array<i64: 32, 256>}]} {
    %c0_i32 = arith.constant 0 : i32
    %0 = arith.cmpi eq, %arg2, %c0_i32 : i32
    %1 = arith.extui %0 : i1 to i32
    %c0_i32_0 = arith.constant 0 : i32
    %2 = arith.cmpi ne, %1, %c0_i32_0 : i32
    scf.if %2 {
      %cst_9 = arith.constant 0.000000e+00 : f32
      %14 = vector.broadcast %cst_9 : f32 to vector<32x256xf32>
      %c0_10 = arith.constant 0 : index
      %c0_11 = arith.constant 0 : index
      %15 = vector.load %arg7[%c0_10, %c0_11] : memref<32x256xf32, #tpu.memory_space<vmem>>, vector<32x256xf32>
      tpu.vector_store %arg7[%c0_10, %c0_11], %14 {strides = array<i32>} : memref<32x256xf32, #tpu.memory_space<vmem>>, vector<32x256xf32>,
    } else {
    }
    %c0 = arith.constant 0 : index
    %c0_1 = arith.constant 0 : index
    %3 = vector.load %arg7[%c0, %c0_1] : memref<32x256xf32, #tpu.memory_space<vmem>>, vector<32x256xf32>
    %c0_2 = arith.constant 0 : index
    %c0_3 = arith.constant 0 : index
    %4 = vector.load %arg3[%c0_2, %c0_3] : memref<32x128xf32, #tpu.memory_space<vmem>>, vector<32x128xf32>
    %5 = arith.truncf %4 : vector<32x128xf32> to vector<32x128xbf16>
    %c0_4 = arith.constant 0 : index
    %c0_5 = arith.constant 0 : index
    %6 = vector.load %arg4[%c0_4, %c0_5] : memref<128x256xf32, #tpu.memory_space<vmem>>, vector<128x256xf32>
    %7 = arith.truncf %6 : vector<128x256xf32> to vector<128x256xbf16>
    %cst = arith.constant dense<0.000000e+00> : vector<32x256xf32>
    %8 = tpu.matmul %5, %7, %cst {dimension_numbers = #tpu.dot_dimension_numbers<[1], [0], [0], [1], [0, 0, 1, 1], [], []>} : vector<32x128xbf16>, vector<128x256xbf16>, vector<32x256xf32> -> vector<32x256xf32>
    %9 = arith.addf %3, %8 : vector<32x256xf32>
    %c0_6 = arith.constant 0 : index
    %c0_7 = arith.constant 0 : index
    %10 = vector.load %arg7[%c0_6, %c0_7] : memref<32x256xf32, #tpu.memory_space<vmem>>, vector<32x256xf32>
    tpu.vector_store %arg7[%c0_6, %c0_7], %9 {strides = array<i32>} : memref<32x256xf32, #tpu.memory_space<vmem>>, vector<32x256xf32>,
    %c1_i32 = arith.constant 1 : i32
    %11 = arith.cmpi eq, %arg2, %c1_i32 : i32
    %12 = arith.extui %11 : i1 to i32
    %c0_i32_8 = arith.constant 0 : i32
    %13 = arith.cmpi ne, %12, %c0_i32_8 : i32
    scf.if %13 {
      %c0_9 = arith.constant 0 : index
      %c0_10 = arith.constant 0 : index
      %14 = vector.load %arg7[%c0_9, %c0_10] : memref<32x256xf32, #tpu.memory_space<vmem>>, vector<32x256xf32>
      %c0_11 = arith.constant 0 : index
      %c0_12 = arith.constant 0 : index
      %15 = vector.load %arg5[%c0_11, %c0_12] : memref<1x256xf32, #tpu.memory_space<vmem>>, vector<1x256xf32>
      %16 = vector.broadcast %15 : vector<1x256xf32> to vector<32x256xf32>
      %17 = arith.addf %14, %16 : vector<32x256xf32>
      %c0_13 = arith.constant 0 : index
      %c0_14 = arith.constant 0 : index
      %18 = vector.load %arg6[%c0_13, %c0_14] : memref<32x256xf32, #tpu.memory_space<vmem>>, vector<32x256xf32>
      tpu.vector_store %arg6[%c0_13, %c0_14], %17 {strides = array<i32>} : memref<32x256xf32, #tpu.memory_space<vmem>>, vector<32x256xf32>,
    } else {
    }
    return
  }
  func.func @transform_0(%arg0: i32, %arg1: i32, %arg2: i32) -> (i32, i32) {
    %c0_i32 = arith.constant 0 : i32
    return %arg0, %arg2 : i32, i32
  }
  func.func @transform_1(%arg0: i32, %arg1: i32, %arg2: i32) -> (i32, i32) {
    %c0_i32 = arith.constant 0 : i32
    return %arg2, %arg1 : i32, i32
  }
  func.func @transform_2(%arg0: i32, %arg1: i32, %arg2: i32) -> (i32, i32) {
    %c0_i32 = arith.constant 0 : i32
    %c0_i32_0 = arith.constant 0 : i32
    return %c0_i32, %arg1 : i32, i32
  }
  func.func @transform_3(%arg0: i32, %arg1: i32, %arg2: i32) -> (i32, i32) {
    %c0_i32 = arith.constant 0 : i32
    return %arg0, %arg1 : i32, i32
  }
}

module attributes {stable_mosaic.version = 11 : i64} {
  func.func @_flash_attn_kernel(%arg0: i32, %arg1: i32, %arg2: i32, %arg3: i32, %arg4: memref<1x1x8x64xf32, #tpu.memory_space<vmem>>, %arg5: memref<1x1x8x64xf32, #tpu.memory_space<vmem>>, %arg6: memref<1x1x8x64xf32, #tpu.memory_space<vmem>>, %arg7: memref<1x1x8x64xf32, #tpu.memory_space<vmem>>, %arg8: memref<8x1xf32, #tpu.memory_space<vmem>>, %arg9: memref<8x1xf32, #tpu.memory_space<vmem>>, %arg10: memref<8x64xf32, #tpu.memory_space<vmem>>) attributes {dimension_semantics = [#tpu.dimension_semantics<parallel>, #tpu.dimension_semantics<parallel>, #tpu.dimension_semantics<parallel>, #tpu.dimension_semantics<arbitrary>], iteration_bounds = array<i64: 2, 4, 2, 2>, scalar_prefetch = 0 : i64, scratch_operands = 3 : i64, tpu.core_type = #tpu.core_type<tc>, window_params = [{transform_indices = @transform_0, window_bounds = array<i64: 1, 1, 8, 64>}, {transform_indices = @transform_1, window_bounds = array<i64: 1, 1, 8, 64>}, {transform_indices = @transform_2, window_bounds = array<i64: 1, 1, 8, 64>}, {transform_indices = @transform_3, window_bounds = array<i64: 1, 1, 8, 64>}]} {
    %c0_i32 = arith.constant 0 : i32
    %0 = arith.cmpi eq, %arg3, %c0_i32 : i32
    %1 = arith.extui %0 : i1 to i32
    %c0_i32_0 = arith.constant 0 : i32
    %2 = arith.cmpi ne, %1, %c0_i32_0 : i32
    scf.if %2 {
      %cst = arith.constant -1.000000e+30 : f32
      %12 = vector.broadcast %cst : f32 to vector<8x1xf32>
      %c0 = arith.constant 0 : index
      %c0_4 = arith.constant 0 : index
      %13 = vector.load %arg8[%c0, %c0_4] : memref<8x1xf32, #tpu.memory_space<vmem>>, vector<8x1xf32>
      tpu.vector_store %arg8[%c0, %c0_4], %12 {strides = array<i32>} : memref<8x1xf32, #tpu.memory_space<vmem>>, vector<8x1xf32>,
      %cst_5 = arith.constant 0.000000e+00 : f32
      %14 = vector.broadcast %cst_5 : f32 to vector<8x1xf32>
      %c0_6 = arith.constant 0 : index
      %c0_7 = arith.constant 0 : index
      %15 = vector.load %arg9[%c0_6, %c0_7] : memref<8x1xf32, #tpu.memory_space<vmem>>, vector<8x1xf32>
      tpu.vector_store %arg9[%c0_6, %c0_7], %14 {strides = array<i32>} : memref<8x1xf32, #tpu.memory_space<vmem>>, vector<8x1xf32>,
      %cst_8 = arith.constant 0.000000e+00 : f32
      %16 = vector.broadcast %cst_8 : f32 to vector<8x64xf32>
      %c0_9 = arith.constant 0 : index
      %c0_10 = arith.constant 0 : index
      %17 = vector.load %arg10[%c0_9, %c0_10] : memref<8x64xf32, #tpu.memory_space<vmem>>, vector<8x64xf32>
      tpu.vector_store %arg10[%c0_9, %c0_10], %16 {strides = array<i32>} : memref<8x64xf32, #tpu.memory_space<vmem>>, vector<8x64xf32>,
    } else {
    }
    %3 = arith.cmpi slt, %arg3, %arg2 : i32
    %4 = arith.extui %3 : i1 to i32
    %c0_i32_1 = arith.constant 0 : i32
    %5 = arith.cmpi ne, %4, %c0_i32_1 : i32
    scf.if %5 {
      %c0 = arith.constant 0 : index
      %c0_4 = arith.constant 0 : index
      %c0_5 = arith.constant 0 : index
      %c0_6 = arith.constant 0 : index
      %12 = vector.load %arg4[%c0, %c0_4, %c0_5, %c0_6] : memref<1x1x8x64xf32, #tpu.memory_space<vmem>>, vector<1x1x8x64xf32>
      %13 = vector.shape_cast %12 : vector<1x1x8x64xf32> to vector<8x64xf32>
      %cst = arith.constant 1.250000e-01 : f32
      %14 = vector.broadcast %cst : f32 to vector<8x64xf32>
      %15 = arith.mulf %13, %14 : vector<8x64xf32>
      %16 = arith.truncf %15 : vector<8x64xf32> to vector<8x64xbf16>
      %c0_7 = arith.constant 0 : index
      %c0_8 = arith.constant 0 : index
      %c0_9 = arith.constant 0 : index
      %c0_10 = arith.constant 0 : index
      %17 = vector.load %arg5[%c0_7, %c0_8, %c0_9, %c0_10] : memref<1x1x8x64xf32, #tpu.memory_space<vmem>>, vector<1x1x8x64xf32>
      %18 = vector.shape_cast %17 : vector<1x1x8x64xf32> to vector<8x64xf32>
      %19 = arith.truncf %18 : vector<8x64xf32> to vector<8x64xbf16>
      %cst_11 = arith.constant dense<0.000000e+00> : vector<8x8xf32>
      %20 = tpu.matmul %16, %19, %cst_11 {dimension_numbers = #tpu.dot_dimension_numbers<[1], [1], [0], [0], [0, 0, 1, 0], [], []>} : vector<8x64xbf16>, vector<8x64xbf16>, vector<8x8xf32> -> vector<8x8xf32>
      %c0_12 = arith.constant 0 : index
      %c0_13 = arith.constant 0 : index
      %21 = vector.load %arg8[%c0_12, %c0_13] : memref<8x1xf32, #tpu.memory_space<vmem>>, vector<8x1xf32>
      %cst_14 = arith.constant dense<0xFF800000> : vector<8xf32>
      %22 = vector.multi_reduction <maximumf>, %20, %cst_14 [1] : vector<8x8xf32> to vector<8xf32>
      %23 = vector.shape_cast %22 : vector<8xf32> to vector<8x1xf32>
      %24 = arith.maximumf %21, %23 : vector<8x1xf32>
      %25 = arith.subf %21, %24 : vector<8x1xf32>
      %26 = math.exp %25 : vector<8x1xf32>
      %27 = vector.broadcast %24 : vector<8x1xf32> to vector<8x8xf32>
      %28 = arith.subf %20, %27 : vector<8x8xf32>
      %29 = math.exp %28 : vector<8x8xf32>
      %c0_15 = arith.constant 0 : index
      %c0_16 = arith.constant 0 : index
      %30 = vector.load %arg9[%c0_15, %c0_16] : memref<8x1xf32, #tpu.memory_space<vmem>>, vector<8x1xf32>
      %31 = arith.mulf %26, %30 : vector<8x1xf32>
      %cst_17 = arith.constant dense<0.000000e+00> : vector<8xf32>
      %32 = vector.multi_reduction <add>, %29, %cst_17 [1] : vector<8x8xf32> to vector<8xf32>
      %33 = vector.shape_cast %32 : vector<8xf32> to vector<8x1xf32>
      %34 = arith.addf %31, %33 : vector<8x1xf32>
      %c0_18 = arith.constant 0 : index
      %c0_19 = arith.constant 0 : index
      %35 = vector.load %arg9[%c0_18, %c0_19] : memref<8x1xf32, #tpu.memory_space<vmem>>, vector<8x1xf32>
      tpu.vector_store %arg9[%c0_18, %c0_19], %34 {strides = array<i32>} : memref<8x1xf32, #tpu.memory_space<vmem>>, vector<8x1xf32>,
      %c0_20 = arith.constant 0 : index
      %c0_21 = arith.constant 0 : index
      %36 = vector.load %arg10[%c0_20, %c0_21] : memref<8x64xf32, #tpu.memory_space<vmem>>, vector<8x64xf32>
      %37 = vector.broadcast %26 : vector<8x1xf32> to vector<8x64xf32>
      %38 = arith.mulf %37, %36 : vector<8x64xf32>
      %39 = arith.truncf %29 : vector<8x8xf32> to vector<8x8xbf16>
      %c0_22 = arith.constant 0 : index
      %c0_23 = arith.constant 0 : index
      %c0_24 = arith.constant 0 : index
      %c0_25 = arith.constant 0 : index
      %40 = vector.load %arg6[%c0_22, %c0_23, %c0_24, %c0_25] : memref<1x1x8x64xf32, #tpu.memory_space<vmem>>, vector<1x1x8x64xf32>
      %41 = vector.shape_cast %40 : vector<1x1x8x64xf32> to vector<8x64xf32>
      %42 = arith.truncf %41 : vector<8x64xf32> to vector<8x64xbf16>
      %cst_26 = arith.constant dense<0.000000e+00> : vector<8x64xf32>
      %43 = tpu.matmul %39, %42, %cst_26 {dimension_numbers = #tpu.dot_dimension_numbers<[1], [0], [0], [1], [0, 0, 1, 1], [], []>} : vector<8x8xbf16>, vector<8x64xbf16>, vector<8x64xf32> -> vector<8x64xf32>
      %44 = arith.addf %38, %43 : vector<8x64xf32>
      %c0_27 = arith.constant 0 : index
      %c0_28 = arith.constant 0 : index
      %45 = vector.load %arg10[%c0_27, %c0_28] : memref<8x64xf32, #tpu.memory_space<vmem>>, vector<8x64xf32>
      tpu.vector_store %arg10[%c0_27, %c0_28], %44 {strides = array<i32>} : memref<8x64xf32, #tpu.memory_space<vmem>>, vector<8x64xf32>,
      %c0_29 = arith.constant 0 : index
      %c0_30 = arith.constant 0 : index
      %46 = vector.load %arg8[%c0_29, %c0_30] : memref<8x1xf32, #tpu.memory_space<vmem>>, vector<8x1xf32>
      tpu.vector_store %arg8[%c0_29, %c0_30], %24 {strides = array<i32>} : memref<8x1xf32, #tpu.memory_space<vmem>>, vector<8x1xf32>,
    } else {
    }
    %6 = arith.cmpi eq, %arg3, %arg2 : i32
    %7 = arith.extui %6 : i1 to i32
    %c0_i32_2 = arith.constant 0 : i32
    %8 = arith.cmpi ne, %7, %c0_i32_2 : i32
    scf.if %8 {
      %c0 = arith.constant 0 : index
      %c0_4 = arith.constant 0 : index
      %c0_5 = arith.constant 0 : index
      %c0_6 = arith.constant 0 : index
      %12 = vector.load %arg4[%c0, %c0_4, %c0_5, %c0_6] : memref<1x1x8x64xf32, #tpu.memory_space<vmem>>, vector<1x1x8x64xf32>
      %13 = vector.shape_cast %12 : vector<1x1x8x64xf32> to vector<8x64xf32>
      %cst = arith.constant 1.250000e-01 : f32
      %14 = vector.broadcast %cst : f32 to vector<8x64xf32>
      %15 = arith.mulf %13, %14 : vector<8x64xf32>
      %16 = arith.truncf %15 : vector<8x64xf32> to vector<8x64xbf16>
      %c0_7 = arith.constant 0 : index
      %c0_8 = arith.constant 0 : index
      %c0_9 = arith.constant 0 : index
      %c0_10 = arith.constant 0 : index
      %17 = vector.load %arg5[%c0_7, %c0_8, %c0_9, %c0_10] : memref<1x1x8x64xf32, #tpu.memory_space<vmem>>, vector<1x1x8x64xf32>
      %18 = vector.shape_cast %17 : vector<1x1x8x64xf32> to vector<8x64xf32>
      %19 = arith.truncf %18 : vector<8x64xf32> to vector<8x64xbf16>
      %cst_11 = arith.constant dense<0.000000e+00> : vector<8x8xf32>
      %20 = tpu.matmul %16, %19, %cst_11 {dimension_numbers = #tpu.dot_dimension_numbers<[1], [1], [0], [0], [0, 0, 1, 0], [], []>} : vector<8x64xbf16>, vector<8x64xbf16>, vector<8x8xf32> -> vector<8x8xf32>
      %c8_i32 = arith.constant 8 : i32
      %21 = arith.muli %arg2, %c8_i32 : i32
      %22 = tpu.iota {dimensions = array<i32: 0>} : vector<8x8xi32>
      %23 = vector.broadcast %21 : i32 to vector<8x8xi32>
      %24 = arith.addi %23, %22 : vector<8x8xi32>
      %c8_i32_12 = arith.constant 8 : i32
      %25 = arith.muli %arg3, %c8_i32_12 : i32
      %26 = tpu.iota {dimensions = array<i32: 1>} : vector<8x8xi32>
      %27 = vector.broadcast %25 : i32 to vector<8x8xi32>
      %28 = arith.addi %27, %26 : vector<8x8xi32>
      %29 = arith.cmpi sge, %24, %28 : vector<8x8xi32>
      %cst_13 = arith.constant -1.000000e+30 : f32
      %30 = vector.broadcast %cst_13 : f32 to vector<8x8xf32>
      %31 = arith.select %29, %20, %30 : vector<8x8xi1>, vector<8x8xf32>
      %c0_14 = arith.constant 0 : index
      %c0_15 = arith.constant 0 : index
      %32 = vector.load %arg8[%c0_14, %c0_15] : memref<8x1xf32, #tpu.memory_space<vmem>>, vector<8x1xf32>
      %cst_16 = arith.constant dense<0xFF800000> : vector<8xf32>
      %33 = vector.multi_reduction <maximumf>, %31, %cst_16 [1] : vector<8x8xf32> to vector<8xf32>
      %34 = vector.shape_cast %33 : vector<8xf32> to vector<8x1xf32>
      %35 = arith.maximumf %32, %34 : vector<8x1xf32>
      %36 = arith.subf %32, %35 : vector<8x1xf32>
      %37 = math.exp %36 : vector<8x1xf32>
      %38 = vector.broadcast %35 : vector<8x1xf32> to vector<8x8xf32>
      %39 = arith.subf %31, %38 : vector<8x8xf32>
      %40 = math.exp %39 : vector<8x8xf32>
      %c0_17 = arith.constant 0 : index
      %c0_18 = arith.constant 0 : index
      %41 = vector.load %arg9[%c0_17, %c0_18] : memref<8x1xf32, #tpu.memory_space<vmem>>, vector<8x1xf32>
      %42 = arith.mulf %37, %41 : vector<8x1xf32>
      %cst_19 = arith.constant dense<0.000000e+00> : vector<8xf32>
      %43 = vector.multi_reduction <add>, %40, %cst_19 [1] : vector<8x8xf32> to vector<8xf32>
      %44 = vector.shape_cast %43 : vector<8xf32> to vector<8x1xf32>
      %45 = arith.addf %42, %44 : vector<8x1xf32>
      %c0_20 = arith.constant 0 : index
      %c0_21 = arith.constant 0 : index
      %46 = vector.load %arg9[%c0_20, %c0_21] : memref<8x1xf32, #tpu.memory_space<vmem>>, vector<8x1xf32>
      tpu.vector_store %arg9[%c0_20, %c0_21], %45 {strides = array<i32>} : memref<8x1xf32, #tpu.memory_space<vmem>>, vector<8x1xf32>,
      %c0_22 = arith.constant 0 : index
      %c0_23 = arith.constant 0 : index
      %47 = vector.load %arg10[%c0_22, %c0_23] : memref<8x64xf32, #tpu.memory_space<vmem>>, vector<8x64xf32>
      %48 = vector.broadcast %37 : vector<8x1xf32> to vector<8x64xf32>
      %49 = arith.mulf %48, %47 : vector<8x64xf32>
      %50 = arith.truncf %40 : vector<8x8xf32> to vector<8x8xbf16>
      %c0_24 = arith.constant 0 : index
      %c0_25 = arith.constant 0 : index
      %c0_26 = arith.constant 0 : index
      %c0_27 = arith.constant 0 : index
      %51 = vector.load %arg6[%c0_24, %c0_25, %c0_26, %c0_27] : memref<1x1x8x64xf32, #tpu.memory_space<vmem>>, vector<1x1x8x64xf32>
      %52 = vector.shape_cast %51 : vector<1x1x8x64xf32> to vector<8x64xf32>
      %53 = arith.truncf %52 : vector<8x64xf32> to vector<8x64xbf16>
      %cst_28 = arith.constant dense<0.000000e+00> : vector<8x64xf32>
      %54 = tpu.matmul %50, %53, %cst_28 {dimension_numbers = #tpu.dot_dimension_numbers<[1], [0], [0], [1], [0, 0, 1, 1], [], []>} : vector<8x8xbf16>, vector<8x64xbf16>, vector<8x64xf32> -> vector<8x64xf32>
      %55 = arith.addf %49, %54 : vector<8x64xf32>
      %c0_29 = arith.constant 0 : index
      %c0_30 = arith.constant 0 : index
      %56 = vector.load %arg10[%c0_29, %c0_30] : memref<8x64xf32, #tpu.memory_space<vmem>>, vector<8x64xf32>
      tpu.vector_store %arg10[%c0_29, %c0_30], %55 {strides = array<i32>} : memref<8x64xf32, #tpu.memory_space<vmem>>, vector<8x64xf32>,
      %c0_31 = arith.constant 0 : index
      %c0_32 = arith.constant 0 : index
      %57 = vector.load %arg8[%c0_31, %c0_32] : memref<8x1xf32, #tpu.memory_space<vmem>>, vector<8x1xf32>
      tpu.vector_store %arg8[%c0_31, %c0_32], %35 {strides = array<i32>} : memref<8x1xf32, #tpu.memory_space<vmem>>, vector<8x1xf32>,
    } else {
    }
    %c1_i32 = arith.constant 1 : i32
    %9 = arith.cmpi eq, %arg3, %c1_i32 : i32
    %10 = arith.extui %9 : i1 to i32
    %c0_i32_3 = arith.constant 0 : i32
    %11 = arith.cmpi ne, %10, %c0_i32_3 : i32
    scf.if %11 {
      %c0 = arith.constant 0 : index
      %c0_4 = arith.constant 0 : index
      %12 = vector.load %arg9[%c0, %c0_4] : memref<8x1xf32, #tpu.memory_space<vmem>>, vector<8x1xf32>
      %13 = tpu.reciprocal %12 {approx = true} : vector<8x1xf32> -> vector<8x1xf32>
      %c0_5 = arith.constant 0 : index
      %c0_6 = arith.constant 0 : index
      %14 = vector.load %arg10[%c0_5, %c0_6] : memref<8x64xf32, #tpu.memory_space<vmem>>, vector<8x64xf32>
      %15 = vector.broadcast %13 : vector<8x1xf32> to vector<8x64xf32>
      %16 = arith.mulf %14, %15 : vector<8x64xf32>
      %c0_7 = arith.constant 0 : index
      %c0_8 = arith.constant 0 : index
      %c0_9 = arith.constant 0 : index
      %c0_10 = arith.constant 0 : index
      %17 = vector.load %arg7[%c0_7, %c0_8, %c0_9, %c0_10] : memref<1x1x8x64xf32, #tpu.memory_space<vmem>>, vector<1x1x8x64xf32>
      %18 = vector.shape_cast %17 : vector<1x1x8x64xf32> to vector<8x64xf32>
      %19 = vector.shape_cast %16 : vector<8x64xf32> to vector<1x1x8x64xf32>
      tpu.vector_store %arg7[%c0_7, %c0_8, %c0_9, %c0_10], %19 {strides = array<i32>} : memref<1x1x8x64xf32, #tpu.memory_space<vmem>>, vector<1x1x8x64xf32>,
    } else {
    }
    return
  }
  func.func @transform_0(%arg0: i32, %arg1: i32, %arg2: i32, %arg3: i32) -> (i32, i32, i32, i32) {
    %c0_i32 = arith.constant 0 : i32
    %c0_i32_0 = arith.constant 0 : i32
    return %arg0, %arg1, %arg2, %c0_i32 : i32, i32, i32, i32
  }
  func.func @transform_1(%arg0: i32, %arg1: i32, %arg2: i32, %arg3: i32) -> (i32, i32, i32, i32) {
    %0 = arith.minsi %arg3, %arg2 : i32
    %c0_i32 = arith.constant 0 : i32
    %c0_i32_0 = arith.constant 0 : i32
    return %arg0, %arg1, %0, %c0_i32 : i32, i32, i32, i32
  }
  func.func @transform_2(%arg0: i32, %arg1: i32, %arg2: i32, %arg3: i32) -> (i32, i32, i32, i32) {
    %0 = arith.minsi %arg3, %arg2 : i32
    %c0_i32 = arith.constant 0 : i32
    %c0_i32_0 = arith.constant 0 : i32
    return %arg0, %arg1, %0, %c0_i32 : i32, i32, i32, i32
  }
  func.func @transform_3(%arg0: i32, %arg1: i32, %arg2: i32, %arg3: i32) -> (i32, i32, i32, i32) {
    %c0_i32 = arith.constant 0 : i32
    %c0_i32_0 = arith.constant 0 : i32
    return %arg0, %arg1, %arg2, %c0_i32 : i32, i32, i32, i32
  }
}

</mosaic_0001>

<llo_original>
// kernel: causal_self_attention.3
$region0: #{causal_self_attention.3}
  #allocation0 [shape = 'u32[]', space=smem, size = 0x4, offset = 0x4, fixed_abs, tag = 'smem constant byte address 0x4 - core index']
  #allocation1 [shape = 'u32[144,128]{1,0:T(1,128)}', space=vmem, size = 0x12000, scoped, tag = 'internal scratch']
  #allocation2 [shape = 'f32[32,256]{1,0:T(8,128)}', space=vmem, size = 0x8000, scoped, tag = 'scratch operand']
  %s0 = inlined_call_operand.hbm [shape: f32[32,256], index: 0, kind: input, shape index: {}]
  %s1 = inlined_call_operand.hbm [shape: f32[256,768], index: 1, kind: input, shape index: {}]
  %s2 = inlined_call_operand.vmem [shape: f32[1,768], index: 2, kind: input, shape index: {}]
  %s3 = inlined_call_operand.vmem [shape: f32[32,768], index: 3, kind: output, shape index: {}]
  %s4 = sld [smem:[#allocation0]]
  $region80: #{causal_self_attention.3} parent=0
    _
  %s6 = ssub.s32 1, %s4
  %s7 = scalar_select 0, %s6, %s4
  $region1: #{causal_self_attention.3} parent=0
    #allocation3 [shape = 'u8[32768]{0}', space=vmem, size = 0x8000, scoped, tag = 'input window, operand 0']
    #allocation4 [shape = 's32[2]{0}', space=sflag, size = 0x8, scoped, tag = 'scoped memory for causal_self_attention.3']
    #allocation5 [shape = 'u8[262144]{0}', space=vmem, size = 0x40000, scoped, tag = 'input window, operand 1']
    #allocation6 [shape = 's32[2]{0}', space=sflag, size = 0x8, scoped, tag = 'scoped memory for causal_self_attention.3']
    #allocation7 [shape = 'u8[65536]{0}', space=vmem, size = 0x10000, scoped, tag = 'output window, operand 0']
    %8 = vsyncpa [#allocation4], 0
    %s9 = scalar_lea.sflag [#allocation4], 1
    %10 = vsyncpa %s9, 0
    %11 = vsyncpa [#allocation6], 0
    %s12 = scalar_lea.sflag [#allocation6], 1
    %13 = vsyncpa %s12, 0
    loop: start=0, step=1, limit=8
    $region2: #{causal_self_attention.3} parent=1 // loop_pre_header
      _
    $region3: #{causal_self_attention.3} parent=1 // loop_header
      %s15 = sphi 0, %s19
      %p16 = scmp.ge.s32.totalorder %s15, 8
      %s22 = sphi 0, %s41
      %s23 = sphi 0, %s37
      %s24 = sphi 0, %s33
      %s25 = sphi 0, %s22
      %s26 = sphi 0, %s23
      %s27 = sphi 0, %s24
      %s28 = sphi 0, %s25
      %s29 = sphi 0, %s26
      %s30 = sphi 0, %s27
      %s46 = sphi 0, %s48
      %s49 = sphi 0, %s46
      %s50 = sphi 0, %s49
      %s66 = sphi 0, %s50
      %s74 = sphi 0, %s76
      %s77 = sphi 0, %s74
      %s78 = sphi 0, %s77
      %s94 = sphi 0, %s78
      %s100 = sphi 0, %s102
      %s103 = sphi 0, %s100
      %s104 = sphi 0, %s103
      %s120 = sphi 0, %s104
      %s128 = sphi 0, %s130
      %s131 = sphi 0, %s128
      %s132 = sphi 0, %s131
      %s148 = sphi 0, %s132
    $region4: #{causal_self_attention.3} parent=1 // loop_header_branch
      %18 = sbr.rel (%p16) target = $region8
    $region5: #{causal_self_attention.3} parent=1 // loop_body
      %s20 = ssub.s32 %s15, 1
      %s21 = ssub.s32 %s15, 2
      %s31 = sadd.s32 1, %s24
      %p32 = scmp.ge.s32.totalorder %s31, 2
      %s33 = scalar_select %p32, 0, %s31
      %s34 = sadd.s32 1, %s23
      %s35 = scalar_select %p32, %s34, %s23
      %p36 = scmp.ge.s32.totalorder %s35, 3
      %s37 = scalar_select %p36, 0, %s35
      %s38 = sadd.s32 1, %s22
      %s39 = scalar_select %p36, %s38, %s22
      %p40 = scmp.ge.s32.totalorder %s39, 1
      %s41 = scalar_select %p40, 0, %s39
      %s42 = ssub.s32 %s22, %s41
      %s43 = ssub.s32 %s24, %s33
      %s44 = sor.u32 %s42, %s43
      %p45 = scmp.eq.s32.totalorder %s44, 0
      %s47 = sadd.s32 %s46, 1
      %s48 = scalar_select %p45, %s46, %s47
      %p51 = pneg %p45
      %p52 = scmp.eq.s32.totalorder %s15, 5
      %p53 = por %p51, %p52
      %p54 = scmp.ne.s32.totalorder %s46, %s49
      %p55 = scmp.eq.s32.totalorder %s15, 0
      %p56 = por %p54, %p55
      %p57 = scmp.ne.s32.totalorder %s46, %s49
      %p58 = scmp.eq.s32.totalorder %s20, 5
      %p59 = por %p57, %p58
      %p60 = scmp.ne.s32.totalorder %s49, %s50
      %p61 = scmp.eq.s32.totalorder %s20, 0
      %p62 = por %p60, %p61
      %p63 = scmp.ne.s32.totalorder %s49, %s50
      %p64 = scmp.eq.s32.totalorder %s21, 5
      %p65 = por %p63, %p64
      %p67 = scmp.ne.s32.totalorder %s50, %s66
      %p68 = scmp.eq.s32.totalorder %s21, 0
      %p69 = por %p67, %p68
      %s70 = ssub.s32 %s24, %s33
      %s71 = ssub.s32 %s23, %s37
      %s72 = sor.u32 %s70, %s71
      %p73 = scmp.eq.s32.totalorder %s72, 0
      %s75 = sadd.s32 %s74, 1
      %s76 = scalar_select %p73, %s74, %s75
      %p79 = pneg %p73
      %p80 = scmp.eq.s32.totalorder %s15, 5
      %p81 = por %p79, %p80
      %p82 = scmp.ne.s32.totalorder %s74, %s77
      %p83 = scmp.eq.s32.totalorder %s15, 0
      %p84 = por %p82, %p83
      %p85 = scmp.ne.s32.totalorder %s74, %s77
      %p86 = scmp.eq.s32.totalorder %s20, 5
      %p87 = por %p85, %p86
      %p88 = scmp.ne.s32.totalorder %s77, %s78
      %p89 = scmp.eq.s32.totalorder %s20, 0
      %p90 = por %p88, %p89
      %p91 = scmp.ne.s32.totalorder %s77, %s78
      %p92 = scmp.eq.s32.totalorder %s21, 5
      %p93 = por %p91, %p92
      %p95 = scmp.ne.s32.totalorder %s78, %s94
      %p96 = scmp.eq.s32.totalorder %s21, 0
      %p97 = por %p95, %p96
      %s98 = ssub.s32 %s23, %s37
      %p99 = scmp.eq.s32.totalorder %s98, 0
      %s101 = sadd.s32 %s100, 1
      %s102 = scalar_select %p99, %s100, %s101
      %p105 = pneg %p99
      %p106 = scmp.eq.s32.totalorder %s15, 5
      %p107 = por %p105, %p106
      %p108 = scmp.ne.s32.totalorder %s100, %s103
      %p109 = scmp.eq.s32.totalorder %s15, 0
      %p110 = por %p108, %p109
      %p111 = scmp.ne.s32.totalorder %s100, %s103
      %p112 = scmp.eq.s32.totalorder %s20, 5
      %p113 = por %p111, %p112
      %p114 = scmp.ne.s32.totalorder %s103, %s104
      %p115 = scmp.eq.s32.totalorder %s20, 0
      %p116 = por %p114, %p115
      %p117 = scmp.ne.s32.totalorder %s103, %s104
      %p118 = scmp.eq.s32.totalorder %s21, 5
      %p119 = por %p117, %p118
      %p121 = scmp.ne.s32.totalorder %s104, %s120
      %p122 = scmp.eq.s32.totalorder %s21, 0
      %p123 = por %p121, %p122
      %s124 = ssub.s32 %s22, %s41
      %s125 = ssub.s32 %s23, %s37
      %s126 = sor.u32 %s124, %s125
      %p127 = scmp.eq.s32.totalorder %s126, 0
      %s129 = sadd.s32 %s128, 1
      %s130 = scalar_select %p127, %s128, %s129
      %p133 = pneg %p127
      %p134 = scmp.eq.s32.totalorder %s15, 5
      %p135 = por %p133, %p134
      %p136 = scmp.ne.s32.totalorder %s128, %s131
      %p137 = scmp.eq.s32.totalorder %s15, 0
      %p138 = por %p136, %p137
      %p139 = scmp.ne.s32.totalorder %s128, %s131
      %p140 = scmp.eq.s32.totalorder %s20, 5
      %p141 = por %p139, %p140
      %p142 = scmp.ne.s32.totalorder %s131, %s132
      %p143 = scmp.eq.s32.totalorder %s20, 0
      %p144 = por %p142, %p143
      %p145 = scmp.ne.s32.totalorder %s131, %s132
      %p146 = scmp.eq.s32.totalorder %s21, 5
      %p147 = por %p145, %p146
      %p149 = scmp.ne.s32.totalorder %s132, %s148
      %p150 = scmp.eq.s32.totalorder %s21, 0
      %p151 = por %p149, %p150
      %p152 = scmp.le.s32.totalorder 1, %s15
      %p153 = scmp.lt.s32.totalorder %s15, 7
      %p154 = pnand %p152, %p153
      %p155 = pneg %p154
      // Predicated region
      $region9: #{causal_self_attention.3} parent=5 // pred_check
        _
      $region10: #{causal_self_attention.3} parent=5 // pred_check_branch
        %157 = sbr.rel (%p154) target = $region12
      $region11: #{causal_self_attention.3} parent=5 // pred_region
        %s158 = ssub.s32 %s15, 1
      $region12: #{causal_self_attention.3} parent=5 // pred_fallthru
        _
      %p159 = scmp.lt.s32.totalorder %s15, 6
      // Predicated region
      $region13: #{causal_self_attention.3} parent=5 // pred_check
        %p160 = pneg %p159
      $region14: #{causal_self_attention.3} parent=5 // pred_check_branch
        %162 = sbr.rel (%p160) target = $region16
      $region15: #{causal_self_attention.3} parent=5 // pred_region
        // Predicated region
        $region17: #{causal_self_attention.3} parent=15 // pred_check
          %p163 = pneg %p56
        $region18: #{causal_self_attention.3} parent=15 // pred_check_branch
          %165 = sbr.rel (%p163) target = $region20
        $region19: #{causal_self_attention.3} parent=15 // pred_region
          %s166 = sand.u32 %s46, 1
          %s167 = scalar_lea.sflag [#allocation4], %s166
          %s168 = sand.u32 %s46, 1
          %s169 = smul.addr %s168, 32
          %s170 = scalar_lea.vmem [#allocation3], %s169
          %s171 = smul.u32 4, %s22
          %s173 = ssub.s32 512, 512
          %174 = vsyncadd %s167, %s173
          %s175 = smul.addr %s171, 2
          %s176 = sadd.s32 %s24, %s175
          %s177 = smul.addr %s176, 128
          %s178 = scalar_lea.hbm %s0, %s177
          %s179 = sshll.u32 %s170, 4
          %s180 = int_to_ptr.vmem [resolvable:$true] %s179
          %185 = dma.hbm_to_vmem [thread:$0]  %s178, 512, %s180, %s167, 256, 128, 8
        $region20: #{causal_self_attention.3} parent=15 // pred_fallthru
          _
        // Predicated region
        $region21: #{causal_self_attention.3} parent=15 // pred_check
          %p186 = pneg %p84
        $region22: #{causal_self_attention.3} parent=15 // pred_check_branch
          %188 = sbr.rel (%p186) target = $region24
        $region23: #{causal_self_attention.3} parent=15 // pred_region
          %s189 = sand.u32 %s74, 1
          %s190 = scalar_lea.sflag [#allocation6], %s189
          %s191 = sand.u32 %s74, 1
          %s192 = smul.addr %s191, 256
          %s193 = scalar_lea.vmem [#allocation5], %s192
          %s194 = smul.u32 16, %s24
          %s195 = smul.u32 2, %s23
          %s197 = ssub.s32 4096, 4096
          %198 = vsyncadd %s190, %s197
          %s199 = smul.addr %s194, 6
          %s200 = sadd.s32 %s195, %s199
          %s201 = smul.addr %s200, 128
          %s202 = scalar_lea.hbm %s1, %s201
          %s203 = sshll.u32 %s193, 4
          %s204 = int_to_ptr.vmem [resolvable:$true] %s203
          %209 = dma.hbm_to_vmem [thread:$0]  %s202, 4096, %s204, %s190, 768, 256, 16
        $region24: #{causal_self_attention.3} parent=15 // pred_fallthru
          _
        // Predicated region
        $region25: #{causal_self_attention.3} parent=15 // pred_check
          %p210 = pneg %p110
        $region26: #{causal_self_attention.3} parent=15 // pred_check_branch
          %212 = sbr.rel (%p210) target = $region28
        $region27: #{causal_self_attention.3} parent=15 // pred_region
          %s213 = smul.u32 2, %s23
          %p214 = scmp.lt.s32.totalorder %s213, 5
          %s215 = scalar_select %p214, %s213, 5
          %s216 = scalar_lea.vmem %s2, %s215
          %s217 = smul.u32 2, %s23
        $region28: #{causal_self_attention.3} parent=15 // pred_fallthru
          _
      $region16: #{causal_self_attention.3} parent=5 // pred_fallthru
        _
      %p218 = scmp.le.s32.totalorder 1, %s15
      %p219 = scmp.lt.s32.totalorder %s15, 7
      %p220 = pnand %p218, %p219
      %p221 = pneg %p220
      // Predicated region
      $region29: #{causal_self_attention.3} parent=5 // pred_check
        _
      $region30: #{causal_self_attention.3} parent=5 // pred_check_branch
        %223 = sbr.rel (%p220) target = $region32
      $region31: #{causal_self_attention.3} parent=5 // pred_region
        %s224 = ssub.s32 %s15, 1
        %s225 = sand.u32 %s49, 1
        %s226 = scalar_lea.sflag [#allocation4], %s225
        %s227 = sand.u32 %s49, 1
        %s228 = smul.addr %s227, 32
        %s229 = scalar_lea.vmem [#allocation3], %s228
        // Predicated region
        $region33: #{causal_self_attention.3} parent=31 // pred_check
          %p230 = pneg %p62
        $region34: #{causal_self_attention.3} parent=31 // pred_check_branch
          %232 = sbr.rel (%p230) target = $region36
        $region35: #{causal_self_attention.3} parent=31 // pred_region
          %233 = dma.done %s226, 512
        $region36: #{causal_self_attention.3} parent=31 // pred_fallthru
          _
        %s234 = sand.u32 %s77, 1
        %s235 = scalar_lea.sflag [#allocation6], %s234
        %s236 = sand.u32 %s77, 1
        %s237 = smul.addr %s236, 256
        %s238 = scalar_lea.vmem [#allocation5], %s237
        // Predicated region
        $region37: #{causal_self_attention.3} parent=31 // pred_check
          %p239 = pneg %p90
        $region38: #{causal_self_attention.3} parent=31 // pred_check_branch
          %241 = sbr.rel (%p239) target = $region40
        $region39: #{causal_self_attention.3} parent=31 // pred_region
          %242 = dma.done %s235, 4096
        $region40: #{causal_self_attention.3} parent=31 // pred_fallthru
          _
        %s243 = sand.u32 %s49, 1
        %s244 = scalar_lea.sflag [#allocation4], %s243
        %s245 = sand.u32 %s49, 1
        %s246 = smul.addr %s245, 32
        %s247 = scalar_lea.vmem [#allocation3], %s246
        %p248 = pneg %p62
        %p249 = pneg %p59
        %s250 = sand.u32 %s77, 1
        %s251 = scalar_lea.sflag [#allocation6], %s250
        %s252 = sand.u32 %s77, 1
        %s253 = smul.addr %s252, 256
        %s254 = scalar_lea.vmem [#allocation5], %s253
        %p255 = pneg %p90
        %p256 = pneg %p87
        %s257 = smul.u32 2, %s26
        %p258 = scmp.lt.s32.totalorder %s257, 5
        %s259 = scalar_select %p258, %s257, 5
        %s260 = scalar_lea.vmem %s2, %s259
        %p261 = pneg %p116
        %p262 = pneg %p113
        %p263 = pneg %p144
        %p264 = pneg %p141
        %s265 = sand.u32 %s131, 1
        %s266 = sand.u32 %s131, 1
        %s267 = smul.addr %s266, 64
        %s268 = scalar_lea.vmem [#allocation7], %s267
        %s269 = smul.u32 4, %s25
        %s270 = smul.u32 16, %s27
        %s271 = smul.u32 2, %s26
        %s272 = smul.u32 2, %s26
        %p273 = scmp.lt.s32.totalorder %s272, 5
        %s274 = scalar_select %p273, %s272, 5
        %s275 = scalar_lea.vmem %s2, %s274
        %s276 = smul.u32 2, %s26
        %s277 = smul.u32 4, %s25
        %s278 = smul.u32 2, %s26
        %p280 = scmp.eq.s32.totalorder %s27, 0
        // Predicated region
        $region41: #{causal_self_attention.3} parent=31 // pred_check
          %p281 = pneg %p280
        $region42: #{causal_self_attention.3} parent=31 // pred_check_branch
          %283 = sbr.rel (%p281) target = $region44
        $region43: #{causal_self_attention.3} parent=31 // pred_region
          %284 = vst [vmem:[#allocation2] sm:$0xff] 0.0
          %285 = vst [vmem:[#allocation2 + $0x8] sm:$0xff] 0.0
          %286 = vst [vmem:[#allocation2 + $0x10] sm:$0xff] 0.0
          %287 = vst [vmem:[#allocation2 + $0x18] sm:$0xff] 0.0
          %288 = vst [vmem:[#allocation2 + $0x20] sm:$0xff] 0.0
          %289 = vst [vmem:[#allocation2 + $0x28] sm:$0xff] 0.0
          %290 = vst [vmem:[#allocation2 + $0x30] sm:$0xff] 0.0
          %291 = vst [vmem:[#allocation2 + $0x38] sm:$0xff] 0.0
        $region44: #{causal_self_attention.3} parent=31 // pred_fallthru
          _
        %v292 = vld [vmem:[#allocation2] sm:$0xff]
        %v293 = vld [vmem:[#allocation2 + $0x8] sm:$0xff]
        %v294 = vld [vmem:[#allocation2 + $0x10] sm:$0xff]
        %v295 = vld [vmem:[#allocation2 + $0x18] sm:$0xff]
        %v296 = vld [vmem:[#allocation2 + $0x20] sm:$0xff]
        %v297 = vld [vmem:[#allocation2 + $0x28] sm:$0xff]
        %v298 = vld [vmem:[#allocation2 + $0x30] sm:$0xff]
        %v299 = vld [vmem:[#allocation2 + $0x38] sm:$0xff]
        %v300 = vld [vmem:[%s229] sm:$0xff]
        %v301 = vld [vmem:[%s229 + $0x8] sm:$0xff]
        %v302 = vld [vmem:[%s229 + $0x10] sm:$0xff]
        %v303 = vld [vmem:[%s229 + $0x18] sm:$0xff]
        %v304 = vpack.c.bf16 %v301, %v300
        %v305 = vpack.c.bf16 %v303, %v302
        %v306 = vld [vmem:[%s238] sm:$0xff]
        %v307 = vld [vmem:[%s238 + $0x8] sm:$0xff]
        %v308 = vld [vmem:[%s238 + $0x10] sm:$0xff]
        %v309 = vld [vmem:[%s238 + $0x18] sm:$0xff]
        %v310 = vld [vmem:[%s238 + $0x20] sm:$0xff]
        %v311 = vld [vmem:[%s238 + $0x28] sm:$0xff]
        %v312 = vld [vmem:[%s238 + $0x30] sm:$0xff]
        %v313 = vld [vmem:[%s238 + $0x38] sm:$0xff]
        %v314 = vld [vmem:[%s238 + $0x40] sm:$0xff]
        %v315 = vld [vmem:[%s238 + $0x48] sm:$0xff]
        %v316 = vld [vmem:[%s238 + $0x50] sm:$0xff]
        %v317 = vld [vmem:[%s238 + $0x58] sm:$0xff]
        %v318 = vld [vmem:[%s238 + $0x60] sm:$0xff]
        %v319 = vld [vmem:[%s238 + $0x68] sm:$0xff]
        %v320 = vld [vmem:[%s238 + $0x70] sm:$0xff]
        %v321 = vld [vmem:[%s238 + $0x78] sm:$0xff]
        %v322 = vld [vmem:[%s238 + $0x80] sm:$0xff]
        %v323 = vld [vmem:[%s238 + $0x88] sm:$0xff]
        %v324 = vld [vmem:[%s238 + $0x90] sm:$0xff]
        %v325 = vld [vmem:[%s238 + $0x98] sm:$0xff]
        %v326 = vld [vmem:[%s238 + $0xa0] sm:$0xff]
        %v327 = vld [vmem:[%s238 + $0xa8] sm:$0xff]
        %v328 = vld [vmem:[%s238 + $0xb0] sm:$0xff]
        %v329 = vld [vmem:[%s238 + $0xb8] sm:$0xff]
        %v330 = vld [vmem:[%s238 + $0xc0] sm:$0xff]
        %v331 = vld [vmem:[%s238 + $0xc8] sm:$0xff]
        %v332 = vld [vmem:[%s238 + $0xd0] sm:$0xff]
        %v333 = vld [vmem:[%s238 + $0xd8] sm:$0xff]
        %v334 = vld [vmem:[%s238 + $0xe0] sm:$0xff]
        %v335 = vld [vmem:[%s238 + $0xe8] sm:$0xff]
        %v336 = vld [vmem:[%s238 + $0xf0] sm:$0xff]
        %v337 = vld [vmem:[%s238 + $0xf8] sm:$0xff]
        %v338 = vpack.c.bf16 %v308, %v306
        %v339 = vpack.c.bf16 %v309, %v307
        %v340 = vpack.c.bf16 %v312, %v310
        %v341 = vpack.c.bf16 %v313, %v311
        %v342 = vpack.c.bf16 %v316, %v314
        %v343 = vpack.c.bf16 %v317, %v315
        %v344 = vpack.c.bf16 %v320, %v318
        %v345 = vpack.c.bf16 %v321, %v319
        %v346 = vpack.c.bf16 %v324, %v322
        %v347 = vpack.c.bf16 %v325, %v323
        %v348 = vpack.c.bf16 %v328, %v326
        %v349 = vpack.c.bf16 %v329, %v327
        %v350 = vpack.c.bf16 %v332, %v330
        %v351 = vpack.c.bf16 %v333, %v331
        %v352 = vpack.c.bf16 %v336, %v334
        %v353 = vpack.c.bf16 %v337, %v335
        %354 = vmatprep.subr.bf16.mxu0 %v353
        %355 = vmatpush1.bf16.msra.mxu0 %v352
        %356 = vmatprep.subr.bf16.mxu0 %v351
        %357 = vmatpush1.bf16.msra.mxu0 %v350
        %358 = vmatprep.subr.bf16.mxu0 %v349
        %359 = vmatpush1.bf16.msra.mxu0 %v348
        %360 = vmatprep.subr.bf16.mxu0 %v347
        %361 = vmatpush1.bf16.msra.mxu0 %v346
        %362 = vmatprep.subr.bf16.mxu0 %v345
        %363 = vmatpush1.bf16.msra.mxu0 %v344
        %364 = vmatprep.subr.bf16.mxu0 %v343
        %365 = vmatpush1.bf16.msra.mxu0 %v342
        %366 = vmatprep.subr.bf16.mxu0 %v341
        %367 = vmatpush1.bf16.msra.mxu0 %v340
        %368 = vmatprep.subr.bf16.mxu0 %v339
        %369 = vmatpush1.bf16.msra.mxu0 %v338
        %370 = vmatprep.subr.bf16.mxu0 0
        %371 = vmatpush2.bf16.msra.mxu0 0
        %372 = vmatprep.subr.bf16.mxu0 0
        %373 = vmatpush2.bf16.msra.mxu0 0
        %374 = vmatprep.subr.bf16.mxu0 0
        %375 = vmatpush2.bf16.msra.mxu0 0
        %376 = vmatprep.subr.bf16.mxu0 0
        %377 = vmatpush2.bf16.msra.mxu0 0
        %378 = vmatprep.subr.bf16.mxu0 0
        %379 = vmatpush2.bf16.msra.mxu0 0
        %380 = vmatprep.subr.bf16.mxu0 0
        %381 = vmatpush2.bf16.msra.mxu0 0
        %382 = vmatprep.subr.bf16.mxu0 0
        %383 = vmatpush2.bf16.msra.mxu0 0
        %384 = vmatprep.subr.bf16.mxu0 0
        %385 = vmatpush2.bf16.msra.mxu0 0
        %386 = vmatprep.mubr.bf16.mxu0 0
        %387 = vmatmul.mubr.bf16.gmra.mxu0 %v304
        %v388 = vpop.f32.mrf.mxu0
        %v389 = vadd.f32 0.0, %v388
        %v390 = vpop.f32.mrf.mxu0
        %v391 = vadd.f32 0.0, %v390
        %v392 = vpop.f32.mrf.mxu0
        %v393 = vadd.f32 0.0, %v392
        %v394 = vpop.f32.mrf.mxu0
        %v395 = vadd.f32 0.0, %v394
        %396 = vmatprep.mubr.bf16.mxu0 0
        %397 = vmatmul.mubr.bf16.gmra.mxu0 %v305
        %v398 = vpop.f32.mrf.mxu0
        %v399 = vadd.f32 0.0, %v398
        %v400 = vpop.f32.mrf.mxu0
        %v401 = vadd.f32 0.0, %v400
        %v402 = vpop.f32.mrf.mxu0
        %v403 = vadd.f32 0.0, %v402
        %v404 = vpop.f32.mrf.mxu0
        %v405 = vadd.f32 0.0, %v404
        %406 = vdwg.mxu0
        %v407 = vadd.f32 %v292, %v389
        %v408 = vadd.f32 %v293, %v391
        %v409 = vadd.f32 %v294, %v393
        %v410 = vadd.f32 %v295, %v395
        %v411 = vadd.f32 %v296, %v399
        %v412 = vadd.f32 %v297, %v401
        %v413 = vadd.f32 %v298, %v403
        %v414 = vadd.f32 %v299, %v405
        %415 = vst [vmem:[#allocation2] sm:$0xff] %v407
        %416 = vst [vmem:[#allocation2 + $0x8] sm:$0xff] %v408
        %417 = vst [vmem:[#allocation2 + $0x10] sm:$0xff] %v409
        %418 = vst [vmem:[#allocation2 + $0x18] sm:$0xff] %v410
        %419 = vst [vmem:[#allocation2 + $0x20] sm:$0xff] %v411
        %420 = vst [vmem:[#allocation2 + $0x28] sm:$0xff] %v412
        %421 = vst [vmem:[#allocation2 + $0x30] sm:$0xff] %v413
        %422 = vst [vmem:[#allocation2 + $0x38] sm:$0xff] %v414
        %p423 = scmp.eq.s32.totalorder %s27, 1
        // Predicated region
        $region45: #{causal_self_attention.3} parent=31 // pred_check
          %p424 = pneg %p423
        $region46: #{causal_self_attention.3} parent=31 // pred_check_branch
          %426 = sbr.rel (%p424) target = $region48
        $region47: #{causal_self_attention.3} parent=31 // pred_region
          %v427 = vld [vmem:[#allocation2] sm:$0xff]
          %v428 = vld [vmem:[#allocation2 + $0x8] sm:$0xff]
          %v429 = vld [vmem:[#allocation2 + $0x10] sm:$0xff]
          %v430 = vld [vmem:[#allocation2 + $0x18] sm:$0xff]
          %v431 = vld [vmem:[#allocation2 + $0x20] sm:$0xff]
          %v432 = vld [vmem:[#allocation2 + $0x28] sm:$0xff]
          %v433 = vld [vmem:[#allocation2 + $0x30] sm:$0xff]
          %v434 = vld [vmem:[#allocation2 + $0x38] sm:$0xff]
          %v435 = vld [vmem:[%s275] sm:$0x3]
          %v437 = vlaneseq
          %v438 = vshrl.u32 %v437, 7
          %v439 = vsub.s32 0, %v438
          %v440 = vrot.slane %v435, %v439
          %v441 = vlaneseq
          %v442 = vshrl.u32 %v441, 7
          %v443 = vsub.s32 1, %v442
          %v444 = vrot.slane %v435, %v443
          %v447 = vadd.f32 %v427, %v440
          %v448 = vadd.f32 %v428, %v444
          %v449 = vadd.f32 %v429, %v440
          %v450 = vadd.f32 %v430, %v444
          %v451 = vadd.f32 %v431, %v440
          %v452 = vadd.f32 %v432, %v444
          %v453 = vadd.f32 %v433, %v440
          %v454 = vadd.f32 %v434, %v444
          %455 = vst [vmem:[%s268] sm:$0xff] %v447
          %456 = vst [vmem:[%s268 + $0x8] sm:$0xff] %v448
          %457 = vst [vmem:[%s268 + $0x10] sm:$0xff] %v449
          %458 = vst [vmem:[%s268 + $0x18] sm:$0xff] %v450
          %459 = vst [vmem:[%s268 + $0x20] sm:$0xff] %v451
          %460 = vst [vmem:[%s268 + $0x28] sm:$0xff] %v452
          %461 = vst [vmem:[%s268 + $0x30] sm:$0xff] %v453
          %462 = vst [vmem:[%s268 + $0x38] sm:$0xff] %v454
        $region48: #{causal_self_attention.3} parent=31 // pred_fallthru
          _
        %s463 = sand.u32 %s131, 1
        %s464 = sand.u32 %s131, 1
        %s465 = smul.addr %s464, 64
        %s466 = scalar_lea.vmem [#allocation7], %s465
        // Predicated region
        $region49: #{causal_self_attention.3} parent=31 // pred_check
          %p467 = pneg %p141
        $region50: #{causal_self_attention.3} parent=31 // pred_check_branch
          %469 = sbr.rel (%p467) target = $region52
        $region51: #{causal_self_attention.3} parent=31 // pred_region
          %s470 = smul.u32 4, %s25
          %s471 = smul.u32 2, %s26
          %s472 = smul.addr %s470, 6
          %s473 = sadd.s32 %s471, %s472
          %s474 = smul.addr %s473, 8
          %s475 = scalar_lea.vmem %s3, %s474
          // Predicated region
          $region53: #{causal_self_attention.3} parent=51 // pred_check
            _
          $region54: #{causal_self_attention.3} parent=51 // pred_check_branch
            %477 = sbr.rel (0) target = $region56
          $region55: #{causal_self_attention.3} parent=51 // pred_region
            // Predicated region
            $region57: #{causal_self_attention.3} parent=55 // pred_check
              _
            $region58: #{causal_self_attention.3} parent=55 // pred_check_branch
              %479 = sbr.rel (0) target = $region60
            $region59: #{causal_self_attention.3} parent=55 // pred_region
              loop: start=0, step=1, limit=1
              $region61: #{causal_self_attention.3} parent=59 // loop_pre_header
                _
              $region62: #{causal_self_attention.3} parent=59 // loop_header
                %s481 = sphi 0, %s485
                %p482 = scmp.ge.s32.totalorder %s481, 1
                %s486 = sphi %s466, %s466
                %s487 = sphi %s475, %s475
              $region63: #{causal_self_attention.3} parent=59 // loop_header_branch
                %484 = sbr.rel (%p482) target = $region67
              $region64: #{causal_self_attention.3} parent=59 // loop_body
                %v488 = vld [vmem:[%s486] sm:$0xff]
                %489 = vst [vmem:[%s487] sm:$0xff] %v488
                %v490 = vld [vmem:[%s486 + $0x8] sm:$0xff]
                %491 = vst [vmem:[%s487 + $0x8] sm:$0xff] %v490
                %v492 = vld [vmem:[%s486 + $0x10] sm:$0xff]
                %493 = vst [vmem:[%s487 + $0x30] sm:$0xff] %v492
                %v494 = vld [vmem:[%s486 + $0x18] sm:$0xff]
                %495 = vst [vmem:[%s487 + $0x38] sm:$0xff] %v494
                %v496 = vld [vmem:[%s486 + $0x20] sm:$0xff]
                %497 = vst [vmem:[%s487 + $0x60] sm:$0xff] %v496
                %v498 = vld [vmem:[%s486 + $0x28] sm:$0xff]
                %499 = vst [vmem:[%s487 + $0x68] sm:$0xff] %v498
                %v500 = vld [vmem:[%s486 + $0x30] sm:$0xff]
                %501 = vst [vmem:[%s487 + $0x90] sm:$0xff] %v500
                %v502 = vld [vmem:[%s486 + $0x38] sm:$0xff]
                %503 = vst [vmem:[%s487 + $0x98] sm:$0xff] %v502
              $region65: #{causal_self_attention.3} parent=59 // loop_footer
                %s485 = sadd.s32 1, %s481
              $region66: #{causal_self_attention.3} parent=59 // loop_footer_branch
                %480 = sbr.rel target = $region62
              $region67: #{causal_self_attention.3} parent=59 // loop_exit
                _
            $region60: #{causal_self_attention.3} parent=55 // pred_fallthru
              _
            // Predicated region
            $region68: #{causal_self_attention.3} parent=55 // pred_check
              _
            $region69: #{causal_self_attention.3} parent=55 // pred_check_branch
              %505 = sbr.rel target = $region71
            $region70: #{causal_self_attention.3} parent=55 // pred_region
              _
            $region71: #{causal_self_attention.3} parent=55 // pred_fallthru
              _
          $region56: #{causal_self_attention.3} parent=51 // pred_fallthru
            _
          %506 = vnop
        $region52: #{causal_self_attention.3} parent=31 // pred_fallthru
          _
      $region32: #{causal_self_attention.3} parent=5 // pred_fallthru
        _
      %p507 = scmp.le.s32.totalorder 2, %s15
      // Predicated region
      $region72: #{causal_self_attention.3} parent=5 // pred_check
        %p508 = pneg %p507
      $region73: #{causal_self_attention.3} parent=5 // pred_check_branch
        %510 = sbr.rel (%p508) target = $region75
      $region74: #{causal_self_attention.3} parent=5 // pred_region
        %s511 = ssub.s32 %s15, 2
        // Predicated region
        $region76: #{causal_self_attention.3} parent=74 // pred_check
          %p512 = pneg %p147
        $region77: #{causal_self_attention.3} parent=74 // pred_check_branch
          %514 = sbr.rel (%p512) target = $region79
        $region78: #{causal_self_attention.3} parent=74 // pred_region
          %s515 = sand.u32 %s132, 1
          %s516 = sand.u32 %s132, 1
          %s517 = smul.addr %s516, 64
          %s518 = scalar_lea.vmem [#allocation7], %s517
        $region79: #{causal_self_attention.3} parent=74 // pred_fallthru
          _
      $region75: #{causal_self_attention.3} parent=5 // pred_fallthru
        _
    $region6: #{causal_self_attention.3} parent=1 // loop_footer
      %s19 = sadd.s32 1, %s15
    $region7: #{causal_self_attention.3} parent=1 // loop_footer_branch
      %14 = sbr.rel target = $region3
    $region8: #{causal_self_attention.3} parent=1 // loop_exit
      _
    %519 = vsyncpa [#allocation4], 1
    %s520 = scalar_lea.sflag [#allocation4], 1
    %521 = vsyncpa %s520, 1
    %522 = vsyncpa [#allocation6], 1
    %s523 = scalar_lea.sflag [#allocation6], 1
    %524 = vsyncpa %s523, 1

// kernel: causal_self_attention.5
$region0: #{causal_self_attention.5}
  #allocation0 [shape = 'u32[]', space=smem, size = 0x4, offset = 0x4, fixed_abs, tag = 'smem constant byte address 0x4 - core index']
  #allocation1 [shape = 'u32[144,128]{1,0:T(1,128)}', space=vmem, size = 0x12000, scoped, tag = 'internal scratch']
  #allocation2 [shape = 'f32[32,256]{1,0:T(8,128)}', space=vmem, size = 0x8000, scoped, tag = 'scratch operand']
  %s0 = inlined_call_operand.vmem [shape: f32[32,256], index: 0, kind: input, shape index: {}]
  %s1 = inlined_call_operand.vmem [shape: f32[256,256], index: 1, kind: input, shape index: {}]
  %s2 = inlined_call_operand.vmem [shape: f32[1,256], index: 2, kind: input, shape index: {}]
  %s3 = inlined_call_operand.hbm [shape: f32[32,256], index: 3, kind: output, shape index: {}]
  %s4 = sld [smem:[#allocation0]]
  $region91: #{causal_self_attention.5} parent=0
    _
  %s6 = ssub.s32 1, %s4
  %s7 = scalar_select 0, %s6, %s4
  $region1: #{causal_self_attention.5} parent=0
    #allocation3 [shape = 'u8[32768]{0}', space=vmem, size = 0x8000, scoped, tag = 'input window, operand 0']
    #allocation4 [shape = 'u8[32768]{0}', space=vmem, size = 0x8000, scoped, tag = 'output window, operand 0, single buffered']
    #allocation5 [shape = 's32[2]{0}', space=sflag, size = 0x8, scoped, tag = 'scoped memory for causal_self_attention.5']
    %8 = vsyncpa [#allocation5], 0
    loop: start=0, step=1, limit=4
    $region2: #{causal_self_attention.5} parent=1 // loop_pre_header
      _
    $region3: #{causal_self_attention.5} parent=1 // loop_header
      %s10 = sphi 0, %s14
      %p11 = scmp.ge.s32.totalorder %s10, 4
      %s17 = sphi 0, %s36
      %s18 = sphi 0, %s32
      %s19 = sphi 0, %s28
      %s20 = sphi 0, %s17
      %s21 = sphi 0, %s18
      %s22 = sphi 0, %s19
      %s23 = sphi 0, %s20
      %s24 = sphi 0, %s21
      %s25 = sphi 0, %s22
      %s41 = sphi 0, %s43
      %s44 = sphi 0, %s41
      %s45 = sphi 0, %s44
      %s61 = sphi 0, %s45
      %s69 = sphi 0, %s71
      %s72 = sphi 0, %s69
      %s73 = sphi 0, %s72
      %s89 = sphi 0, %s73
      %s95 = sphi 0, %s97
      %s98 = sphi 0, %s95
      %s99 = sphi 0, %s98
      %s115 = sphi 0, %s99
      %s123 = sphi 0, %s125
      %s126 = sphi 0, %s123
      %s127 = sphi 0, %s126
      %s143 = sphi 0, %s127
    $region4: #{causal_self_attention.5} parent=1 // loop_header_branch
      %13 = sbr.rel (%p11) target = $region8
    $region5: #{causal_self_attention.5} parent=1 // loop_body
      %s15 = ssub.s32 %s10, 1
      %s16 = ssub.s32 %s10, 2
      %s26 = sadd.s32 1, %s19
      %p27 = scmp.ge.s32.totalorder %s26, 2
      %s28 = scalar_select %p27, 0, %s26
      %s29 = sadd.s32 1, %s18
      %s30 = scalar_select %p27, %s29, %s18
      %p31 = scmp.ge.s32.totalorder %s30, 1
      %s32 = scalar_select %p31, 0, %s30
      %s33 = sadd.s32 1, %s17
      %s34 = scalar_select %p31, %s33, %s17
      %p35 = scmp.ge.s32.totalorder %s34, 1
      %s36 = scalar_select %p35, 0, %s34
      %s37 = ssub.s32 %s17, %s36
      %s38 = ssub.s32 %s19, %s28
      %s39 = sor.u32 %s37, %s38
      %p40 = scmp.eq.s32.totalorder %s39, 0
      %s42 = sadd.s32 %s41, 1
      %s43 = scalar_select %p40, %s41, %s42
      %p46 = pneg %p40
      %p47 = scmp.eq.s32.totalorder %s10, 1
      %p48 = por %p46, %p47
      %p49 = scmp.ne.s32.totalorder %s41, %s44
      %p50 = scmp.eq.s32.totalorder %s10, 0
      %p51 = por %p49, %p50
      %p52 = scmp.ne.s32.totalorder %s41, %s44
      %p53 = scmp.eq.s32.totalorder %s15, 1
      %p54 = por %p52, %p53
      %p55 = scmp.ne.s32.totalorder %s44, %s45
      %p56 = scmp.eq.s32.totalorder %s15, 0
      %p57 = por %p55, %p56
      %p58 = scmp.ne.s32.totalorder %s44, %s45
      %p59 = scmp.eq.s32.totalorder %s16, 1
      %p60 = por %p58, %p59
      %p62 = scmp.ne.s32.totalorder %s45, %s61
      %p63 = scmp.eq.s32.totalorder %s16, 0
      %p64 = por %p62, %p63
      %s65 = ssub.s32 %s19, %s28
      %s66 = ssub.s32 %s18, %s32
      %s67 = sor.u32 %s65, %s66
      %p68 = scmp.eq.s32.totalorder %s67, 0
      %s70 = sadd.s32 %s69, 1
      %s71 = scalar_select %p68, %s69, %s70
      %p74 = pneg %p68
      %p75 = scmp.eq.s32.totalorder %s10, 1
      %p76 = por %p74, %p75
      %p77 = scmp.ne.s32.totalorder %s69, %s72
      %p78 = scmp.eq.s32.totalorder %s10, 0
      %p79 = por %p77, %p78
      %p80 = scmp.ne.s32.totalorder %s69, %s72
      %p81 = scmp.eq.s32.totalorder %s15, 1
      %p82 = por %p80, %p81
      %p83 = scmp.ne.s32.totalorder %s72, %s73
      %p84 = scmp.eq.s32.totalorder %s15, 0
      %p85 = por %p83, %p84
      %p86 = scmp.ne.s32.totalorder %s72, %s73
      %p87 = scmp.eq.s32.totalorder %s16, 1
      %p88 = por %p86, %p87
      %p90 = scmp.ne.s32.totalorder %s73, %s89
      %p91 = scmp.eq.s32.totalorder %s16, 0
      %p92 = por %p90, %p91
      %s93 = ssub.s32 %s18, %s32
      %p94 = scmp.eq.s32.totalorder %s93, 0
      %s96 = sadd.s32 %s95, 1
      %s97 = scalar_select %p94, %s95, %s96
      %p100 = pneg %p94
      %p101 = scmp.eq.s32.totalorder %s10, 1
      %p102 = por %p100, %p101
      %p103 = scmp.ne.s32.totalorder %s95, %s98
      %p104 = scmp.eq.s32.totalorder %s10, 0
      %p105 = por %p103, %p104
      %p106 = scmp.ne.s32.totalorder %s95, %s98
      %p107 = scmp.eq.s32.totalorder %s15, 1
      %p108 = por %p106, %p107
      %p109 = scmp.ne.s32.totalorder %s98, %s99
      %p110 = scmp.eq.s32.totalorder %s15, 0
      %p111 = por %p109, %p110
      %p112 = scmp.ne.s32.totalorder %s98, %s99
      %p113 = scmp.eq.s32.totalorder %s16, 1
      %p114 = por %p112, %p113
      %p116 = scmp.ne.s32.totalorder %s99, %s115
      %p117 = scmp.eq.s32.totalorder %s16, 0
      %p118 = por %p116, %p117
      %s119 = ssub.s32 %s17, %s36
      %s120 = ssub.s32 %s18, %s32
      %s121 = sor.u32 %s119, %s120
      %p122 = scmp.eq.s32.totalorder %s121, 0
      %s124 = sadd.s32 %s123, 1
      %s125 = scalar_select %p122, %s123, %s124
      %p128 = pneg %p122
      %p129 = scmp.eq.s32.totalorder %s10, 1
      %p130 = por %p128, %p129
      %p131 = scmp.ne.s32.totalorder %s123, %s126
      %p132 = scmp.eq.s32.totalorder %s10, 0
      %p133 = por %p131, %p132
      %p134 = scmp.ne.s32.totalorder %s123, %s126
      %p135 = scmp.eq.s32.totalorder %s15, 1
      %p136 = por %p134, %p135
      %p137 = scmp.ne.s32.totalorder %s126, %s127
      %p138 = scmp.eq.s32.totalorder %s15, 0
      %p139 = por %p137, %p138
      %p140 = scmp.ne.s32.totalorder %s126, %s127
      %p141 = scmp.eq.s32.totalorder %s16, 1
      %p142 = por %p140, %p141
      %p144 = scmp.ne.s32.totalorder %s127, %s143
      %p145 = scmp.eq.s32.totalorder %s16, 0
      %p146 = por %p144, %p145
      %p147 = scmp.le.s32.totalorder 1, %s10
      %p148 = scmp.lt.s32.totalorder %s10, 3
      %p149 = pnand %p147, %p148
      %p150 = pneg %p149
      // Predicated region
      $region9: #{causal_self_attention.5} parent=5 // pred_check
        _
      $region10: #{causal_self_attention.5} parent=5 // pred_check_branch
        %152 = sbr.rel (%p149) target = $region12
      $region11: #{causal_self_attention.5} parent=5 // pred_region
        %s153 = ssub.s32 %s10, 1
        // Predicated region
        $region13: #{causal_self_attention.5} parent=11 // pred_check
          %p154 = pneg %p111
        $region14: #{causal_self_attention.5} parent=11 // pred_check_branch
          %156 = sbr.rel (%p154) target = $region16
        $region15: #{causal_self_attention.5} parent=11 // pred_region
          %s157 = smul.u32 2, %s21
          %p158 = scmp.lt.s32.totalorder %s157, 1
          %s159 = scalar_select %p158, %s157, 1
          %s160 = scalar_lea.vmem %s2, %s159
          %s161 = smul.u32 2, %s21
        $region16: #{causal_self_attention.5} parent=11 // pred_fallthru
          _
      $region12: #{causal_self_attention.5} parent=5 // pred_fallthru
        _
      %p162 = scmp.lt.s32.totalorder %s10, 2
      // Predicated region
      $region17: #{causal_self_attention.5} parent=5 // pred_check
        %p163 = pneg %p162
      $region18: #{causal_self_attention.5} parent=5 // pred_check_branch
        %165 = sbr.rel (%p163) target = $region20
      $region19: #{causal_self_attention.5} parent=5 // pred_region
        // Predicated region
        $region21: #{causal_self_attention.5} parent=19 // pred_check
          %p166 = pneg %p51
        $region22: #{causal_self_attention.5} parent=19 // pred_check_branch
          %168 = sbr.rel (%p166) target = $region24
        $region23: #{causal_self_attention.5} parent=19 // pred_region
          %s169 = sand.u32 %s41, 1
          %s170 = sand.u32 %s41, 1
          %s171 = smul.addr %s170, 32
          %s172 = scalar_lea.vmem [#allocation3], %s171
          %s173 = smul.u32 4, %s17
          %s174 = smul.addr %s173, 2
          %s175 = sadd.s32 %s19, %s174
          %s176 = smul.addr %s175, 8
          %s177 = scalar_lea.vmem %s0, %s176
          // Predicated region
          $region25: #{causal_self_attention.5} parent=23 // pred_check
            _
          $region26: #{causal_self_attention.5} parent=23 // pred_check_branch
            %179 = sbr.rel (0) target = $region28
          $region27: #{causal_self_attention.5} parent=23 // pred_region
            // Predicated region
            $region29: #{causal_self_attention.5} parent=27 // pred_check
              _
            $region30: #{causal_self_attention.5} parent=27 // pred_check_branch
              %181 = sbr.rel (0) target = $region32
            $region31: #{causal_self_attention.5} parent=27 // pred_region
              // Predicated region
              $region44: #{causal_self_attention.5} parent=31 // pred_check
                _
              $region45: #{causal_self_attention.5} parent=31 // pred_check_branch
                %203 = sbr.rel (0) target = $region47
              $region46: #{causal_self_attention.5} parent=31 // pred_region
                loop: start=0, step=1, limit=1
                $region48: #{causal_self_attention.5} parent=46 // loop_pre_header
                  _
                $region49: #{causal_self_attention.5} parent=46 // loop_header
                  %s205 = sphi 0, %s209
                  %p206 = scmp.ge.s32.totalorder %s205, 1
                  %s210 = sphi %s177, %s177
                  %s211 = sphi %s172, %s172
                $region50: #{causal_self_attention.5} parent=46 // loop_header_branch
                  %208 = sbr.rel (%p206) target = $region54
                $region51: #{causal_self_attention.5} parent=46 // loop_body
                  %v212 = vld [vmem:[%s210] sm:$0xff]
                  %213 = vst [vmem:[%s211] sm:$0xff] %v212
                  %v214 = vld [vmem:[%s210 + $0x10] sm:$0xff]
                  %215 = vst [vmem:[%s211 + $0x8] sm:$0xff] %v214
                  %v216 = vld [vmem:[%s210 + $0x20] sm:$0xff]
                  %217 = vst [vmem:[%s211 + $0x10] sm:$0xff] %v216
                  %v218 = vld [vmem:[%s210 + $0x30] sm:$0xff]
                  %219 = vst [vmem:[%s211 + $0x18] sm:$0xff] %v218
                $region52: #{causal_self_attention.5} parent=46 // loop_footer
                  %s209 = sadd.s32 1, %s205
                $region53: #{causal_self_attention.5} parent=46 // loop_footer_branch
                  %204 = sbr.rel target = $region49
                $region54: #{causal_self_attention.5} parent=46 // loop_exit
                  _
              $region47: #{causal_self_attention.5} parent=31 // pred_fallthru
                _
              // Predicated region
              $region55: #{causal_self_attention.5} parent=31 // pred_check
                _
              $region56: #{causal_self_attention.5} parent=31 // pred_check_branch
                %221 = sbr.rel target = $region58
              $region57: #{causal_self_attention.5} parent=31 // pred_region
                _
              $region58: #{causal_self_attention.5} parent=31 // pred_fallthru
                _
            $region32: #{causal_self_attention.5} parent=27 // pred_fallthru
              _
            // Predicated region
            $region33: #{causal_self_attention.5} parent=27 // pred_check
              _
            $region34: #{causal_self_attention.5} parent=27 // pred_check_branch
              %183 = sbr.rel target = $region36
            $region35: #{causal_self_attention.5} parent=27 // pred_region
              %s185 = ssub.s32 256, 1
              loop: start=0, step=1, limit=1
              $region37: #{causal_self_attention.5} parent=35 // loop_pre_header
                _
              $region38: #{causal_self_attention.5} parent=35 // loop_header
                %s187 = sphi 0, %s191
                %p188 = scmp.ge.s32.totalorder %s187, 1
                %s192 = sphi %s177, %s177
                %s193 = sphi %s172, %s172
              $region39: #{causal_self_attention.5} parent=35 // loop_header_branch
                %190 = sbr.rel (%p188) target = $region43
              $region40: #{causal_self_attention.5} parent=35 // loop_body
                %v194 = vld [vmem:[%s192] sm:%s185]
                %195 = vst [vmem:[%s193] sm:%s185] %v194
                %v196 = vld [vmem:[%s192 + $0x10] sm:%s185]
                %197 = vst [vmem:[%s193 + $0x8] sm:%s185] %v196
                %v198 = vld [vmem:[%s192 + $0x20] sm:%s185]
                %199 = vst [vmem:[%s193 + $0x10] sm:%s185] %v198
                %v200 = vld [vmem:[%s192 + $0x30] sm:%s185]
                %201 = vst [vmem:[%s193 + $0x18] sm:%s185] %v200
              $region41: #{causal_self_attention.5} parent=35 // loop_footer
                %s191 = sadd.s32 1, %s187
              $region42: #{causal_self_attention.5} parent=35 // loop_footer_branch
                %186 = sbr.rel target = $region38
              $region43: #{causal_self_attention.5} parent=35 // loop_exit
                _
            $region36: #{causal_self_attention.5} parent=27 // pred_fallthru
              _
          $region28: #{causal_self_attention.5} parent=23 // pred_fallthru
            _
          %222 = vnop
        $region24: #{causal_self_attention.5} parent=19 // pred_fallthru
          _
        // Predicated region
        $region59: #{causal_self_attention.5} parent=19 // pred_check
          %p223 = pneg %p79
        $region60: #{causal_self_attention.5} parent=19 // pred_check_branch
          %225 = sbr.rel (%p223) target = $region62
        $region61: #{causal_self_attention.5} parent=19 // pred_region
          %s226 = smul.u32 16, %s19
          %s227 = smul.u32 2, %s18
          %p228 = scmp.lt.s32.totalorder %s226, 31
          %s229 = scalar_select %p228, %s226, 31
          %p230 = scmp.lt.s32.totalorder %s227, 1
          %s231 = scalar_select %p230, %s227, 1
          %s232 = smul.addr %s229, 2
          %s233 = sadd.s32 %s231, %s232
          %s234 = smul.addr %s233, 8
          %s235 = scalar_lea.vmem %s1, %s234
          %s236 = smul.u32 16, %s19
          %s237 = smul.u32 2, %s18
        $region62: #{causal_self_attention.5} parent=19 // pred_fallthru
          _
      $region20: #{causal_self_attention.5} parent=5 // pred_fallthru
        _
      %p238 = scmp.le.s32.totalorder 1, %s10
      %p239 = scmp.lt.s32.totalorder %s10, 3
      %p240 = pnand %p238, %p239
      %p241 = pneg %p240
      // Predicated region
      $region63: #{causal_self_attention.5} parent=5 // pred_check
        _
      $region64: #{causal_self_attention.5} parent=5 // pred_check_branch
        %243 = sbr.rel (%p240) target = $region66
      $region65: #{causal_self_attention.5} parent=5 // pred_region
        %s244 = ssub.s32 %s10, 1
        %s245 = sand.u32 %s44, 1
        %s246 = sand.u32 %s44, 1
        %s247 = smul.addr %s246, 32
        %s248 = scalar_lea.vmem [#allocation3], %s247
        // Predicated region
        $region67: #{causal_self_attention.5} parent=65 // pred_check
          %p249 = pneg %p57
        $region68: #{causal_self_attention.5} parent=65 // pred_check_branch
          %251 = sbr.rel (%p249) target = $region70
        $region69: #{causal_self_attention.5} parent=65 // pred_region
          _
        $region70: #{causal_self_attention.5} parent=65 // pred_fallthru
          _
        %s252 = sand.u32 %s44, 1
        %s253 = sand.u32 %s44, 1
        %s254 = smul.addr %s253, 32
        %s255 = scalar_lea.vmem [#allocation3], %s254
        %p256 = pneg %p57
        %p257 = pneg %p54
        %s258 = smul.u32 16, %s22
        %s259 = smul.u32 2, %s21
        %p260 = scmp.lt.s32.totalorder %s258, 31
        %s261 = scalar_select %p260, %s258, 31
        %p262 = scmp.lt.s32.totalorder %s259, 1
        %s263 = scalar_select %p262, %s259, 1
        %s264 = smul.addr %s261, 2
        %s265 = sadd.s32 %s263, %s264
        %s266 = smul.addr %s265, 8
        %s267 = scalar_lea.vmem %s1, %s266
        %p268 = pneg %p85
        %p269 = pneg %p82
        %s270 = smul.u32 2, %s21
        %p271 = scmp.lt.s32.totalorder %s270, 1
        %s272 = scalar_select %p271, %s270, 1
        %s273 = scalar_lea.vmem %s2, %s272
        %p274 = pneg %p111
        %p275 = pneg %p108
        %p276 = pneg %p139
        %p277 = pneg %p136
        %s278 = smul.u32 4, %s20
        %s279 = smul.u32 16, %s22
        %s280 = smul.u32 2, %s21
        %p281 = scmp.lt.s32.totalorder %s279, 31
        %s282 = scalar_select %p281, %s279, 31
        %p283 = scmp.lt.s32.totalorder %s280, 1
        %s284 = scalar_select %p283, %s280, 1
        %s285 = smul.addr %s282, 2
        %s286 = sadd.s32 %s284, %s285
        %s287 = smul.addr %s286, 8
        %s288 = scalar_lea.vmem %s1, %s287
        %s289 = smul.u32 16, %s22
        %s290 = smul.u32 2, %s21
        %s291 = smul.u32 2, %s21
        %p292 = scmp.lt.s32.totalorder %s291, 1
        %s293 = scalar_select %p292, %s291, 1
        %s294 = scalar_lea.vmem %s2, %s293
        %s295 = smul.u32 2, %s21
        %s296 = smul.u32 4, %s20
        %s297 = smul.u32 2, %s21
        %p299 = scmp.eq.s32.totalorder %s22, 0
        // Predicated region
        $region71: #{causal_self_attention.5} parent=65 // pred_check
          %p300 = pneg %p299
        $region72: #{causal_self_attention.5} parent=65 // pred_check_branch
          %302 = sbr.rel (%p300) target = $region74
        $region73: #{causal_self_attention.5} parent=65 // pred_region
          %303 = vst [vmem:[#allocation2] sm:$0xff] 0.0
          %304 = vst [vmem:[#allocation2 + $0x8] sm:$0xff] 0.0
          %305 = vst [vmem:[#allocation2 + $0x10] sm:$0xff] 0.0
          %306 = vst [vmem:[#allocation2 + $0x18] sm:$0xff] 0.0
          %307 = vst [vmem:[#allocation2 + $0x20] sm:$0xff] 0.0
          %308 = vst [vmem:[#allocation2 + $0x28] sm:$0xff] 0.0
          %309 = vst [vmem:[#allocation2 + $0x30] sm:$0xff] 0.0
          %310 = vst [vmem:[#allocation2 + $0x38] sm:$0xff] 0.0
        $region74: #{causal_self_attention.5} parent=65 // pred_fallthru
          _
        %v311 = vld [vmem:[#allocation2] sm:$0xff]
        %v312 = vld [vmem:[#allocation2 + $0x8] sm:$0xff]
        %v313 = vld [vmem:[#allocation2 + $0x10] sm:$0xff]
        %v314 = vld [vmem:[#allocation2 + $0x18] sm:$0xff]
        %v315 = vld [vmem:[#allocation2 + $0x20] sm:$0xff]
        %v316 = vld [vmem:[#allocation2 + $0x28] sm:$0xff]
        %v317 = vld [vmem:[#allocation2 + $0x30] sm:$0xff]
        %v318 = vld [vmem:[#allocation2 + $0x38] sm:$0xff]
        %v319 = vld [vmem:[%s248] sm:$0xff]
        %v320 = vld [vmem:[%s248 + $0x8] sm:$0xff]
        %v321 = vld [vmem:[%s248 + $0x10] sm:$0xff]
        %v322 = vld [vmem:[%s248 + $0x18] sm:$0xff]
        %v323 = vpack.c.bf16 %v320, %v319
        %v324 = vpack.c.bf16 %v322, %v321
        %v325 = vld [vmem:[%s288] sm:$0xff]
        %v326 = vld [vmem:[%s288 + $0x8] sm:$0xff]
        %v327 = vld [vmem:[%s288 + $0x10] sm:$0xff]
        %v328 = vld [vmem:[%s288 + $0x18] sm:$0xff]
        %v329 = vld [vmem:[%s288 + $0x20] sm:$0xff]
        %v330 = vld [vmem:[%s288 + $0x28] sm:$0xff]
        %v331 = vld [vmem:[%s288 + $0x30] sm:$0xff]
        %v332 = vld [vmem:[%s288 + $0x38] sm:$0xff]
        %v333 = vld [vmem:[%s288 + $0x40] sm:$0xff]
        %v334 = vld [vmem:[%s288 + $0x48] sm:$0xff]
        %v335 = vld [vmem:[%s288 + $0x50] sm:$0xff]
        %v336 = vld [vmem:[%s288 + $0x58] sm:$0xff]
        %v337 = vld [vmem:[%s288 + $0x60] sm:$0xff]
        %v338 = vld [vmem:[%s288 + $0x68] sm:$0xff]
        %v339 = vld [vmem:[%s288 + $0x70] sm:$0xff]
        %v340 = vld [vmem:[%s288 + $0x78] sm:$0xff]
        %v341 = vld [vmem:[%s288 + $0x80] sm:$0xff]
        %v342 = vld [vmem:[%s288 + $0x88] sm:$0xff]
        %v343 = vld [vmem:[%s288 + $0x90] sm:$0xff]
        %v344 = vld [vmem:[%s288 + $0x98] sm:$0xff]
        %v345 = vld [vmem:[%s288 + $0xa0] sm:$0xff]
        %v346 = vld [vmem:[%s288 + $0xa8] sm:$0xff]
        %v347 = vld [vmem:[%s288 + $0xb0] sm:$0xff]
        %v348 = vld [vmem:[%s288 + $0xb8] sm:$0xff]
        %v349 = vld [vmem:[%s288 + $0xc0] sm:$0xff]
        %v350 = vld [vmem:[%s288 + $0xc8] sm:$0xff]
        %v351 = vld [vmem:[%s288 + $0xd0] sm:$0xff]
        %v352 = vld [vmem:[%s288 + $0xd8] sm:$0xff]
        %v353 = vld [vmem:[%s288 + $0xe0] sm:$0xff]
        %v354 = vld [vmem:[%s288 + $0xe8] sm:$0xff]
        %v355 = vld [vmem:[%s288 + $0xf0] sm:$0xff]
        %v356 = vld [vmem:[%s288 + $0xf8] sm:$0xff]
        %v357 = vpack.c.bf16 %v327, %v325
        %v358 = vpack.c.bf16 %v328, %v326
        %v359 = vpack.c.bf16 %v331, %v329
        %v360 = vpack.c.bf16 %v332, %v330
        %v361 = vpack.c.bf16 %v335, %v333
        %v362 = vpack.c.bf16 %v336, %v334
        %v363 = vpack.c.bf16 %v339, %v337
        %v364 = vpack.c.bf16 %v340, %v338
        %v365 = vpack.c.bf16 %v343, %v341
        %v366 = vpack.c.bf16 %v344, %v342
        %v367 = vpack.c.bf16 %v347, %v345
        %v368 = vpack.c.bf16 %v348, %v346
        %v369 = vpack.c.bf16 %v351, %v349
        %v370 = vpack.c.bf16 %v352, %v350
        %v371 = vpack.c.bf16 %v355, %v353
        %v372 = vpack.c.bf16 %v356, %v354
        %373 = vmatprep.subr.bf16.mxu0 %v372
        %374 = vmatpush1.bf16.msra.mxu0 %v371
        %375 = vmatprep.subr.bf16.mxu0 %v370
        %376 = vmatpush1.bf16.msra.mxu0 %v369
        %377 = vmatprep.subr.bf16.mxu0 %v368
        %378 = vmatpush1.bf16.msra.mxu0 %v367
        %379 = vmatprep.subr.bf16.mxu0 %v366
        %380 = vmatpush1.bf16.msra.mxu0 %v365
        %381 = vmatprep.subr.bf16.mxu0 %v364
        %382 = vmatpush1.bf16.msra.mxu0 %v363
        %383 = vmatprep.subr.bf16.mxu0 %v362
        %384 = vmatpush1.bf16.msra.mxu0 %v361
        %385 = vmatprep.subr.bf16.mxu0 %v360
        %386 = vmatpush1.bf16.msra.mxu0 %v359
        %387 = vmatprep.subr.bf16.mxu0 %v358
        %388 = vmatpush1.bf16.msra.mxu0 %v357
        %389 = vmatprep.subr.bf16.mxu0 0
        %390 = vmatpush2.bf16.msra.mxu0 0
        %391 = vmatprep.subr.bf16.mxu0 0
        %392 = vmatpush2.bf16.msra.mxu0 0
        %393 = vmatprep.subr.bf16.mxu0 0
        %394 = vmatpush2.bf16.msra.mxu0 0
        %395 = vmatprep.subr.bf16.mxu0 0
        %396 = vmatpush2.bf16.msra.mxu0 0
        %397 = vmatprep.subr.bf16.mxu0 0
        %398 = vmatpush2.bf16.msra.mxu0 0
        %399 = vmatprep.subr.bf16.mxu0 0
        %400 = vmatpush2.bf16.msra.mxu0 0
        %401 = vmatprep.subr.bf16.mxu0 0
        %402 = vmatpush2.bf16.msra.mxu0 0
        %403 = vmatprep.subr.bf16.mxu0 0
        %404 = vmatpush2.bf16.msra.mxu0 0
        %405 = vmatprep.mubr.bf16.mxu0 0
        %406 = vmatmul.mubr.bf16.gmra.mxu0 %v323
        %v407 = vpop.f32.mrf.mxu0
        %v408 = vadd.f32 0.0, %v407
        %v409 = vpop.f32.mrf.mxu0
        %v410 = vadd.f32 0.0, %v409
        %v411 = vpop.f32.mrf.mxu0
        %v412 = vadd.f32 0.0, %v411
        %v413 = vpop.f32.mrf.mxu0
        %v414 = vadd.f32 0.0, %v413
        %415 = vmatprep.mubr.bf16.mxu0 0
        %416 = vmatmul.mubr.bf16.gmra.mxu0 %v324
        %v417 = vpop.f32.mrf.mxu0
        %v418 = vadd.f32 0.0, %v417
        %v419 = vpop.f32.mrf.mxu0
        %v420 = vadd.f32 0.0, %v419
        %v421 = vpop.f32.mrf.mxu0
        %v422 = vadd.f32 0.0, %v421
        %v423 = vpop.f32.mrf.mxu0
        %v424 = vadd.f32 0.0, %v423
        %425 = vdwg.mxu0
        %v426 = vadd.f32 %v311, %v408
        %v427 = vadd.f32 %v312, %v410
        %v428 = vadd.f32 %v313, %v412
        %v429 = vadd.f32 %v314, %v414
        %v430 = vadd.f32 %v315, %v418
        %v431 = vadd.f32 %v316, %v420
        %v432 = vadd.f32 %v317, %v422
        %v433 = vadd.f32 %v318, %v424
        %434 = vst [vmem:[#allocation2] sm:$0xff] %v426
        %435 = vst [vmem:[#allocation2 + $0x8] sm:$0xff] %v427
        %436 = vst [vmem:[#allocation2 + $0x10] sm:$0xff] %v428
        %437 = vst [vmem:[#allocation2 + $0x18] sm:$0xff] %v429
        %438 = vst [vmem:[#allocation2 + $0x20] sm:$0xff] %v430
        %439 = vst [vmem:[#allocation2 + $0x28] sm:$0xff] %v431
        %440 = vst [vmem:[#allocation2 + $0x30] sm:$0xff] %v432
        %441 = vst [vmem:[#allocation2 + $0x38] sm:$0xff] %v433
        %p442 = scmp.eq.s32.totalorder %s22, 1
        // Predicated region
        $region75: #{causal_self_attention.5} parent=65 // pred_check
          %p443 = pneg %p442
        $region76: #{causal_self_attention.5} parent=65 // pred_check_branch
          %445 = sbr.rel (%p443) target = $region78
        $region77: #{causal_self_attention.5} parent=65 // pred_region
          %v446 = vld [vmem:[#allocation2] sm:$0xff]
          %v447 = vld [vmem:[#allocation2 + $0x8] sm:$0xff]
          %v448 = vld [vmem:[#allocation2 + $0x10] sm:$0xff]
          %v449 = vld [vmem:[#allocation2 + $0x18] sm:$0xff]
          %v450 = vld [vmem:[#allocation2 + $0x20] sm:$0xff]
          %v451 = vld [vmem:[#allocation2 + $0x28] sm:$0xff]
          %v452 = vld [vmem:[#allocation2 + $0x30] sm:$0xff]
          %v453 = vld [vmem:[#allocation2 + $0x38] sm:$0xff]
          %v454 = vld [vmem:[%s294] sm:$0x3]
          %v456 = vlaneseq
          %v457 = vshrl.u32 %v456, 7
          %v458 = vsub.s32 0, %v457
          %v459 = vrot.slane %v454, %v458
          %v460 = vlaneseq
          %v461 = vshrl.u32 %v460, 7
          %v462 = vsub.s32 1, %v461
          %v463 = vrot.slane %v454, %v462
          %v466 = vadd.f32 %v446, %v459
          %v467 = vadd.f32 %v447, %v463
          %v468 = vadd.f32 %v448, %v459
          %v469 = vadd.f32 %v449, %v463
          %v470 = vadd.f32 %v450, %v459
          %v471 = vadd.f32 %v451, %v463
          %v472 = vadd.f32 %v452, %v459
          %v473 = vadd.f32 %v453, %v463
          %474 = vst [vmem:[#allocation4] sm:$0xff] %v466
          %475 = vst [vmem:[#allocation4 + $0x8] sm:$0xff] %v467
          %476 = vst [vmem:[#allocation4 + $0x10] sm:$0xff] %v468
          %477 = vst [vmem:[#allocation4 + $0x18] sm:$0xff] %v469
          %478 = vst [vmem:[#allocation4 + $0x20] sm:$0xff] %v470
          %479 = vst [vmem:[#allocation4 + $0x28] sm:$0xff] %v471
          %480 = vst [vmem:[#allocation4 + $0x30] sm:$0xff] %v472
          %481 = vst [vmem:[#allocation4 + $0x38] sm:$0xff] %v473
        $region78: #{causal_self_attention.5} parent=65 // pred_fallthru
          _
        // Predicated region
        $region79: #{causal_self_attention.5} parent=65 // pred_check
          %p482 = pneg %p136
        $region80: #{causal_self_attention.5} parent=65 // pred_check_branch
          %484 = sbr.rel (%p482) target = $region82
        $region81: #{causal_self_attention.5} parent=65 // pred_region
          %s485 = smul.u32 4, %s20
          %s486 = smul.u32 2, %s21
          %s488 = ssub.s32 1024, 1024
          %489 = vsyncadd [#allocation5], %s488
          %s490 = smul.addr %s485, 2
          %s491 = sadd.s32 %s486, %s490
          %s492 = smul.addr %s491, 128
          %s493 = scalar_lea.hbm %s3, %s492
          %s494 = sshll.u32 [#allocation4], 4
          %s495 = int_to_ptr.vmem [resolvable:$true] %s494
          %500 = dma.vmem_to_hbm [thread:$0]  %s495, 1024, %s493, [#allocation5], 256, 256, 16
        $region82: #{causal_self_attention.5} parent=65 // pred_fallthru
          _
        // Predicated region
        $region83: #{causal_self_attention.5} parent=65 // pred_check
          %p501 = pneg %p136
        $region84: #{causal_self_attention.5} parent=65 // pred_check_branch
          %503 = sbr.rel (%p501) target = $region86
        $region85: #{causal_self_attention.5} parent=65 // pred_region
          %504 = dma.done [#allocation5], 1024
        $region86: #{causal_self_attention.5} parent=65 // pred_fallthru
          _
      $region66: #{causal_self_attention.5} parent=5 // pred_fallthru
        _
      %p505 = scmp.le.s32.totalorder 2, %s10
      // Predicated region
      $region87: #{causal_self_attention.5} parent=5 // pred_check
        %p506 = pneg %p505
      $region88: #{causal_self_attention.5} parent=5 // pred_check_branch
        %508 = sbr.rel (%p506) target = $region90
      $region89: #{causal_self_attention.5} parent=5 // pred_region
        %s509 = ssub.s32 %s10, 2
      $region90: #{causal_self_attention.5} parent=5 // pred_fallthru
        _
    $region6: #{causal_self_attention.5} parent=1 // loop_footer
      %s14 = sadd.s32 1, %s10
    $region7: #{causal_self_attention.5} parent=1 // loop_footer_branch
      %9 = sbr.rel target = $region3
    $region8: #{causal_self_attention.5} parent=1 // loop_exit
      _
    %510 = vsyncpa [#allocation5], 1
    %s511 = scalar_lea.sflag [#allocation5], 1
    %512 = vsyncpa %s511, 1

// kernel: causal_self_attention.4
$region0: #{causal_self_attention.4}
  #allocation0 [shape = 'u32[]', space=smem, size = 0x4, offset = 0x4, fixed_abs, tag = 'smem constant byte address 0x4 - core index']
  #allocation1 [shape = 'u32[144,128]{1,0:T(1,128)}', space=vmem, size = 0x12000, scoped, tag = 'internal scratch']
  #allocation2 [shape = 'f32[8,1]{1,0:T(8,128)}', space=vmem, size = 0x1000, scoped, tag = 'scratch operand']
  #allocation3 [shape = 'f32[8,1]{1,0:T(8,128)}', space=vmem, size = 0x1000, scoped, tag = 'scratch operand']
  #allocation4 [shape = 'f32[8,64]{1,0:T(8,128)}', space=vmem, size = 0x1000, scoped, tag = 'scratch operand']
  %s0 = inlined_call_operand.vmem [shape: f32[2,4,16,64], index: 0, kind: input, shape index: {}]
  %s1 = inlined_call_operand.vmem [shape: f32[2,4,16,64], index: 1, kind: input, shape index: {}]
  %s2 = inlined_call_operand.vmem [shape: f32[2,4,16,64], index: 2, kind: input, shape index: {}]
  %s3 = inlined_call_operand.vmem [shape: f32[2,4,16,64], index: 3, kind: output, shape index: {}]
  %s4 = sld [smem:[#allocation0]]
  $region61: #{causal_self_attention.4} parent=0
    _
  %s6 = ssub.s32 1, %s4
  %s7 = scalar_select 0, %s6, %s4
  loop: start=0, step=1, limit=34
  $region2: #{causal_self_attention.4} parent=0 // loop_pre_header
    _
  $region3: #{causal_self_attention.4} parent=0 // loop_header
    %s9 = sphi 0, %s13
    %p10 = scmp.ge.s32.totalorder %s9, 34
    %s16 = sphi 0, %s42
    %s17 = sphi 0, %s38
    %s18 = sphi 0, %s34
    %s19 = sphi 0, %s30
    %s20 = sphi 0, %s16
    %s21 = sphi 0, %s17
    %s22 = sphi 0, %s18
    %s23 = sphi 0, %s19
    %s24 = sphi 0, %s20
    %s25 = sphi 0, %s21
    %s26 = sphi 0, %s22
    %s27 = sphi 0, %s23
    %s49 = sphi 0, %s51
    %s52 = sphi 0, %s49
    %s53 = sphi 0, %s52
    %s69 = sphi 0, %s53
    %s83 = sphi 0, %s85
    %s86 = sphi 0, %s83
    %s87 = sphi 0, %s86
    %s103 = sphi 0, %s87
    %s117 = sphi 0, %s119
    %s120 = sphi 0, %s117
    %s121 = sphi 0, %s120
    %s137 = sphi 0, %s121
    %s147 = sphi 0, %s149
    %s150 = sphi 0, %s147
    %s151 = sphi 0, %s150
    %s167 = sphi 0, %s151
  $region4: #{causal_self_attention.4} parent=0 // loop_header_branch
    %12 = sbr.rel (%p10) target = $region8
  $region5: #{causal_self_attention.4} parent=0 // loop_body
    %s14 = ssub.s32 %s9, 1
    %s15 = ssub.s32 %s9, 2
    %s28 = sadd.s32 1, %s19
    %p29 = scmp.ge.s32.totalorder %s28, 2
    %s30 = scalar_select %p29, 0, %s28
    %s31 = sadd.s32 1, %s18
    %s32 = scalar_select %p29, %s31, %s18
    %p33 = scmp.ge.s32.totalorder %s32, 2
    %s34 = scalar_select %p33, 0, %s32
    %s35 = sadd.s32 1, %s17
    %s36 = scalar_select %p33, %s35, %s17
    %p37 = scmp.ge.s32.totalorder %s36, 4
    %s38 = scalar_select %p37, 0, %s36
    %s39 = sadd.s32 1, %s16
    %s40 = scalar_select %p37, %s39, %s16
    %p41 = scmp.ge.s32.totalorder %s40, 2
    %s42 = scalar_select %p41, 0, %s40
    %s43 = ssub.s32 %s16, %s42
    %s44 = ssub.s32 %s17, %s38
    %s45 = sor.u32 %s43, %s44
    %s46 = ssub.s32 %s18, %s34
    %s47 = sor.u32 %s45, %s46
    %p48 = scmp.eq.s32.totalorder %s47, 0
    %s50 = sadd.s32 %s49, 1
    %s51 = scalar_select %p48, %s49, %s50
    %p54 = pneg %p48
    %p55 = scmp.eq.s32.totalorder %s9, 31
    %p56 = por %p54, %p55
    %p57 = scmp.ne.s32.totalorder %s49, %s52
    %p58 = scmp.eq.s32.totalorder %s9, 0
    %p59 = por %p57, %p58
    %p60 = scmp.ne.s32.totalorder %s49, %s52
    %p61 = scmp.eq.s32.totalorder %s14, 31
    %p62 = por %p60, %p61
    %p63 = scmp.ne.s32.totalorder %s52, %s53
    %p64 = scmp.eq.s32.totalorder %s14, 0
    %p65 = por %p63, %p64
    %p66 = scmp.ne.s32.totalorder %s52, %s53
    %p67 = scmp.eq.s32.totalorder %s15, 31
    %p68 = por %p66, %p67
    %p70 = scmp.ne.s32.totalorder %s53, %s69
    %p71 = scmp.eq.s32.totalorder %s15, 0
    %p72 = por %p70, %p71
    %p73 = scmp.lt.s32.totalorder %s19, %s18
    %s74 = scalar_select %p73, %s19, %s18
    %p75 = scmp.lt.s32.totalorder %s30, %s34
    %s76 = scalar_select %p75, %s30, %s34
    %s77 = ssub.s32 %s16, %s42
    %s78 = ssub.s32 %s17, %s38
    %s79 = sor.u32 %s77, %s78
    %s80 = ssub.s32 %s74, %s76
    %s81 = sor.u32 %s79, %s80
    %p82 = scmp.eq.s32.totalorder %s81, 0
    %s84 = sadd.s32 %s83, 1
    %s85 = scalar_select %p82, %s83, %s84
    %p88 = pneg %p82
    %p89 = scmp.eq.s32.totalorder %s9, 31
    %p90 = por %p88, %p89
    %p91 = scmp.ne.s32.totalorder %s83, %s86
    %p92 = scmp.eq.s32.totalorder %s9, 0
    %p93 = por %p91, %p92
    %p94 = scmp.ne.s32.totalorder %s83, %s86
    %p95 = scmp.eq.s32.totalorder %s14, 31
    %p96 = por %p94, %p95
    %p97 = scmp.ne.s32.totalorder %s86, %s87
    %p98 = scmp.eq.s32.totalorder %s14, 0
    %p99 = por %p97, %p98
    %p100 = scmp.ne.s32.totalorder %s86, %s87
    %p101 = scmp.eq.s32.totalorder %s15, 31
    %p102 = por %p100, %p101
    %p104 = scmp.ne.s32.totalorder %s87, %s103
    %p105 = scmp.eq.s32.totalorder %s15, 0
    %p106 = por %p104, %p105
    %p107 = scmp.lt.s32.totalorder %s19, %s18
    %s108 = scalar_select %p107, %s19, %s18
    %p109 = scmp.lt.s32.totalorder %s30, %s34
    %s110 = scalar_select %p109, %s30, %s34
    %s111 = ssub.s32 %s16, %s42
    %s112 = ssub.s32 %s17, %s38
    %s113 = sor.u32 %s111, %s112
    %s114 = ssub.s32 %s108, %s110
    %s115 = sor.u32 %s113, %s114
    %p116 = scmp.eq.s32.totalorder %s115, 0
    %s118 = sadd.s32 %s117, 1
    %s119 = scalar_select %p116, %s117, %s118
    %p122 = pneg %p116
    %p123 = scmp.eq.s32.totalorder %s9, 31
    %p124 = por %p122, %p123
    %p125 = scmp.ne.s32.totalorder %s117, %s120
    %p126 = scmp.eq.s32.totalorder %s9, 0
    %p127 = por %p125, %p126
    %p128 = scmp.ne.s32.totalorder %s117, %s120
    %p129 = scmp.eq.s32.totalorder %s14, 31
    %p130 = por %p128, %p129
    %p131 = scmp.ne.s32.totalorder %s120, %s121
    %p132 = scmp.eq.s32.totalorder %s14, 0
    %p133 = por %p131, %p132
    %p134 = scmp.ne.s32.totalorder %s120, %s121
    %p135 = scmp.eq.s32.totalorder %s15, 31
    %p136 = por %p134, %p135
    %p138 = scmp.ne.s32.totalorder %s121, %s137
    %p139 = scmp.eq.s32.totalorder %s15, 0
    %p140 = por %p138, %p139
    %s141 = ssub.s32 %s16, %s42
    %s142 = ssub.s32 %s17, %s38
    %s143 = sor.u32 %s141, %s142
    %s144 = ssub.s32 %s18, %s34
    %s145 = sor.u32 %s143, %s144
    %p146 = scmp.eq.s32.totalorder %s145, 0
    %s148 = sadd.s32 %s147, 1
    %s149 = scalar_select %p146, %s147, %s148
    %p152 = pneg %p146
    %p153 = scmp.eq.s32.totalorder %s9, 31
    %p154 = por %p152, %p153
    %p155 = scmp.ne.s32.totalorder %s147, %s150
    %p156 = scmp.eq.s32.totalorder %s9, 0
    %p157 = por %p155, %p156
    %p158 = scmp.ne.s32.totalorder %s147, %s150
    %p159 = scmp.eq.s32.totalorder %s14, 31
    %p160 = por %p158, %p159
    %p161 = scmp.ne.s32.totalorder %s150, %s151
    %p162 = scmp.eq.s32.totalorder %s14, 0
    %p163 = por %p161, %p162
    %p164 = scmp.ne.s32.totalorder %s150, %s151
    %p165 = scmp.eq.s32.totalorder %s15, 31
    %p166 = por %p164, %p165
    %p168 = scmp.ne.s32.totalorder %s151, %s167
    %p169 = scmp.eq.s32.totalorder %s15, 0
    %p170 = por %p168, %p169
    %p171 = scmp.le.s32.totalorder 1, %s9
    %p172 = scmp.lt.s32.totalorder %s9, 33
    %p173 = pnand %p171, %p172
    %p174 = pneg %p173
    // Predicated region
    $region9: #{causal_self_attention.4} parent=5 // pred_check
      _
    $region10: #{causal_self_attention.4} parent=5 // pred_check_branch
      %176 = sbr.rel (%p173) target = $region12
    $region11: #{causal_self_attention.4} parent=5 // pred_region
      %s177 = ssub.s32 %s9, 1
    $region12: #{causal_self_attention.4} parent=5 // pred_fallthru
      _
    %p178 = scmp.lt.s32.totalorder %s9, 32
    // Predicated region
    $region13: #{causal_self_attention.4} parent=5 // pred_check
      %p179 = pneg %p178
    $region14: #{causal_self_attention.4} parent=5 // pred_check_branch
      %181 = sbr.rel (%p179) target = $region16
    $region15: #{causal_self_attention.4} parent=5 // pred_region
      // Predicated region
      $region17: #{causal_self_attention.4} parent=15 // pred_check
        %p182 = pneg %p59
      $region18: #{causal_self_attention.4} parent=15 // pred_check_branch
        %184 = sbr.rel (%p182) target = $region20
      $region19: #{causal_self_attention.4} parent=15 // pred_region
        %p185 = scmp.lt.s32.totalorder %s16, 1
        %s186 = scalar_select %p185, %s16, 1
        %p187 = scmp.lt.s32.totalorder %s17, 3
        %s188 = scalar_select %p187, %s17, 3
        %p189 = scmp.lt.s32.totalorder %s18, 1
        %s190 = scalar_select %p189, %s18, 1
        %s191 = smul.addr %s188, 2
        %s192 = sadd.s32 %s190, %s191
        %s193 = smul.addr %s186, 8
        %s194 = sadd.s32 %s192, %s193
        %s195 = smul.addr %s194, 8
        %s196 = scalar_lea.vmem %s0, %s195
      $region20: #{causal_self_attention.4} parent=15 // pred_fallthru
        _
      // Predicated region
      $region21: #{causal_self_attention.4} parent=15 // pred_check
        %p197 = pneg %p93
      $region22: #{causal_self_attention.4} parent=15 // pred_check_branch
        %199 = sbr.rel (%p197) target = $region24
      $region23: #{causal_self_attention.4} parent=15 // pred_region
        %p200 = scmp.lt.s32.totalorder %s19, %s18
        %s201 = scalar_select %p200, %s19, %s18
        %p202 = scmp.lt.s32.totalorder %s16, 1
        %s203 = scalar_select %p202, %s16, 1
        %p204 = scmp.lt.s32.totalorder %s17, 3
        %s205 = scalar_select %p204, %s17, 3
        %p206 = scmp.lt.s32.totalorder %s201, 1
        %s207 = scalar_select %p206, %s201, 1
        %s208 = smul.addr %s205, 2
        %s209 = sadd.s32 %s207, %s208
        %s210 = smul.addr %s203, 8
        %s211 = sadd.s32 %s209, %s210
        %s212 = smul.addr %s211, 8
        %s213 = scalar_lea.vmem %s1, %s212
        %p214 = scmp.lt.s32.totalorder %s19, %s18
        %s215 = scalar_select %p214, %s19, %s18
      $region24: #{causal_self_attention.4} parent=15 // pred_fallthru
        _
      // Predicated region
      $region25: #{causal_self_attention.4} parent=15 // pred_check
        %p216 = pneg %p127
      $region26: #{causal_self_attention.4} parent=15 // pred_check_branch
        %218 = sbr.rel (%p216) target = $region28
      $region27: #{causal_self_attention.4} parent=15 // pred_region
        %p219 = scmp.lt.s32.totalorder %s19, %s18
        %s220 = scalar_select %p219, %s19, %s18
        %p221 = scmp.lt.s32.totalorder %s16, 1
        %s222 = scalar_select %p221, %s16, 1
        %p223 = scmp.lt.s32.totalorder %s17, 3
        %s224 = scalar_select %p223, %s17, 3
        %p225 = scmp.lt.s32.totalorder %s220, 1
        %s226 = scalar_select %p225, %s220, 1
        %s227 = smul.addr %s224, 2
        %s228 = sadd.s32 %s226, %s227
        %s229 = smul.addr %s222, 8
        %s230 = sadd.s32 %s228, %s229
        %s231 = smul.addr %s230, 8
        %s232 = scalar_lea.vmem %s2, %s231
        %p233 = scmp.lt.s32.totalorder %s19, %s18
        %s234 = scalar_select %p233, %s19, %s18
      $region28: #{causal_self_attention.4} parent=15 // pred_fallthru
        _
    $region16: #{causal_self_attention.4} parent=5 // pred_fallthru
      _
    %p235 = scmp.le.s32.totalorder 1, %s9
    %p236 = scmp.lt.s32.totalorder %s9, 33
    %p237 = pnand %p235, %p236
    %p238 = pneg %p237
    // Predicated region
    $region29: #{causal_self_attention.4} parent=5 // pred_check
      _
    $region30: #{causal_self_attention.4} parent=5 // pred_check_branch
      %240 = sbr.rel (%p237) target = $region32
    $region31: #{causal_self_attention.4} parent=5 // pred_region
      %s241 = ssub.s32 %s9, 1
      %p242 = scmp.lt.s32.totalorder %s20, 1
      %s243 = scalar_select %p242, %s20, 1
      %p244 = scmp.lt.s32.totalorder %s21, 3
      %s245 = scalar_select %p244, %s21, 3
      %p246 = scmp.lt.s32.totalorder %s22, 1
      %s247 = scalar_select %p246, %s22, 1
      %s248 = smul.addr %s245, 2
      %s249 = sadd.s32 %s247, %s248
      %s250 = smul.addr %s243, 8
      %s251 = sadd.s32 %s249, %s250
      %s252 = smul.addr %s251, 8
      %s253 = scalar_lea.vmem %s0, %s252
      %p254 = pneg %p65
      %p255 = pneg %p62
      %p256 = scmp.lt.s32.totalorder %s23, %s22
      %s257 = scalar_select %p256, %s23, %s22
      %p258 = scmp.lt.s32.totalorder %s20, 1
      %s259 = scalar_select %p258, %s20, 1
      %p260 = scmp.lt.s32.totalorder %s21, 3
      %s261 = scalar_select %p260, %s21, 3
      %p262 = scmp.lt.s32.totalorder %s257, 1
      %s263 = scalar_select %p262, %s257, 1
      %s264 = smul.addr %s261, 2
      %s265 = sadd.s32 %s263, %s264
      %s266 = smul.addr %s259, 8
      %s267 = sadd.s32 %s265, %s266
      %s268 = smul.addr %s267, 8
      %s269 = scalar_lea.vmem %s1, %s268
      %p270 = pneg %p99
      %p271 = pneg %p96
      %p272 = scmp.lt.s32.totalorder %s23, %s22
      %s273 = scalar_select %p272, %s23, %s22
      %p274 = scmp.lt.s32.totalorder %s20, 1
      %s275 = scalar_select %p274, %s20, 1
      %p276 = scmp.lt.s32.totalorder %s21, 3
      %s277 = scalar_select %p276, %s21, 3
      %p278 = scmp.lt.s32.totalorder %s273, 1
      %s279 = scalar_select %p278, %s273, 1
      %s280 = smul.addr %s277, 2
      %s281 = sadd.s32 %s279, %s280
      %s282 = smul.addr %s275, 8
      %s283 = sadd.s32 %s281, %s282
      %s284 = smul.addr %s283, 8
      %s285 = scalar_lea.vmem %s2, %s284
      %p286 = pneg %p133
      %p287 = pneg %p130
      %p288 = pneg %p163
      %p289 = pneg %p160
      %p290 = scmp.lt.s32.totalorder %s20, 1
      %s291 = scalar_select %p290, %s20, 1
      %p292 = scmp.lt.s32.totalorder %s21, 3
      %s293 = scalar_select %p292, %s21, 3
      %p294 = scmp.lt.s32.totalorder %s22, 1
      %s295 = scalar_select %p294, %s22, 1
      %s296 = smul.addr %s293, 2
      %s297 = sadd.s32 %s295, %s296
      %s298 = smul.addr %s291, 8
      %s299 = sadd.s32 %s297, %s298
      %s300 = smul.addr %s299, 8
      %s301 = scalar_lea.vmem %s3, %s300
      %p302 = scmp.lt.s32.totalorder %s20, 1
      %s303 = scalar_select %p302, %s20, 1
      %p304 = scmp.lt.s32.totalorder %s21, 3
      %s305 = scalar_select %p304, %s21, 3
      %p306 = scmp.lt.s32.totalorder %s22, 1
      %s307 = scalar_select %p306, %s22, 1
      %s308 = smul.addr %s305, 2
      %s309 = sadd.s32 %s307, %s308
      %s310 = smul.addr %s303, 8
      %s311 = sadd.s32 %s309, %s310
      %s312 = smul.addr %s311, 8
      %s313 = scalar_lea.vmem %s0, %s312
      %p314 = scmp.lt.s32.totalorder %s23, %s22
      %s315 = scalar_select %p314, %s23, %s22
      %p316 = scmp.lt.s32.totalorder %s20, 1
      %s317 = scalar_select %p316, %s20, 1
      %p318 = scmp.lt.s32.totalorder %s21, 3
      %s319 = scalar_select %p318, %s21, 3
      %p320 = scmp.lt.s32.totalorder %s315, 1
      %s321 = scalar_select %p320, %s315, 1
      %s322 = smul.addr %s319, 2
      %s323 = sadd.s32 %s321, %s322
      %s324 = smul.addr %s317, 8
      %s325 = sadd.s32 %s323, %s324
      %s326 = smul.addr %s325, 8
      %s327 = scalar_lea.vmem %s1, %s326
      %p328 = scmp.lt.s32.totalorder %s23, %s22
      %s329 = scalar_select %p328, %s23, %s22
      %p330 = scmp.lt.s32.totalorder %s23, %s22
      %s331 = scalar_select %p330, %s23, %s22
      %p332 = scmp.lt.s32.totalorder %s20, 1
      %s333 = scalar_select %p332, %s20, 1
      %p334 = scmp.lt.s32.totalorder %s21, 3
      %s335 = scalar_select %p334, %s21, 3
      %p336 = scmp.lt.s32.totalorder %s331, 1
      %s337 = scalar_select %p336, %s331, 1
      %s338 = smul.addr %s335, 2
      %s339 = sadd.s32 %s337, %s338
      %s340 = smul.addr %s333, 8
      %s341 = sadd.s32 %s339, %s340
      %s342 = smul.addr %s341, 8
      %s343 = scalar_lea.vmem %s2, %s342
      %p344 = scmp.lt.s32.totalorder %s23, %s22
      %s345 = scalar_select %p344, %s23, %s22
      %p346 = scmp.lt.s32.totalorder %s20, 1
      %s347 = scalar_select %p346, %s20, 1
      %p348 = scmp.lt.s32.totalorder %s21, 3
      %s349 = scalar_select %p348, %s21, 3
      %p350 = scmp.lt.s32.totalorder %s22, 1
      %s351 = scalar_select %p350, %s22, 1
      %s352 = smul.addr %s349, 2
      %s353 = sadd.s32 %s351, %s352
      %s354 = smul.addr %s347, 8
      %s355 = sadd.s32 %s353, %s354
      %s356 = smul.addr %s355, 8
      %s357 = scalar_lea.vmem %s3, %s356
      %p359 = scmp.eq.s32.totalorder %s23, 0
      // Predicated region
      $region33: #{causal_self_attention.4} parent=31 // pred_check
        %p360 = pneg %p359
      $region34: #{causal_self_attention.4} parent=31 // pred_check_branch
        %362 = sbr.rel (%p360) target = $region36
      $region35: #{causal_self_attention.4} parent=31 // pred_region
        %vm363 = vcmask 7168
        %364 = vst.msk [vmem:[#allocation2] sm:$0xff] %vm363, -1e+30
        %365 = vst.msk [vmem:[#allocation3] sm:$0xff] %vm363, 0.0
        %vm366 = vcmask 523264
        %367 = vst.msk [vmem:[#allocation4] sm:$0xff] %vm366, 0.0
      $region36: #{causal_self_attention.4} parent=31 // pred_fallthru
        _
      %p368 = scmp.lt.s32.totalorder %s23, %s22
      // Predicated region
      $region37: #{causal_self_attention.4} parent=31 // pred_check
        %p369 = pneg %p368
      $region38: #{causal_self_attention.4} parent=31 // pred_check_branch
        %371 = sbr.rel (%p369) target = $region40
      $region39: #{causal_self_attention.4} parent=31 // pred_region
        %v372 = vld [vmem:[%s313] sm:$0xff]
        %v373 = vmul.f32 %v372, 0.125
        %v374 = vpack.c.bf16 %v373, %v373
        %v375 = vld [vmem:[%s327] sm:$0xff]
        %v376 = vpack.c.bf16 %v375, %v375
        %vm377 = vcmask 523264
        %v379 = vsel %vm377, %v374, 0
        %v382 = vsel %vm377, %v376, 0
        %384 = vmatprep.subr.bf16.mxu0 0
        %385 = vmatpush1.bf16.xpose.msra.mxu0 0
        %386 = vmatprep.subr.bf16.mxu0 0
        %387 = vmatpush1.bf16.xpose.msra.mxu0 0
        %388 = vmatprep.subr.bf16.mxu0 0
        %389 = vmatpush1.bf16.xpose.msra.mxu0 0
        %390 = vmatprep.subr.bf16.mxu0 0
        %391 = vmatpush1.bf16.xpose.msra.mxu0 0
        %392 = vmatprep.subr.bf16.mxu0 0
        %393 = vmatpush1.bf16.xpose.msra.mxu0 0
        %394 = vmatprep.subr.bf16.mxu0 0
        %395 = vmatpush1.bf16.xpose.msra.mxu0 0
        %396 = vmatprep.subr.bf16.mxu0 0
        %397 = vmatpush1.bf16.xpose.msra.mxu0 0
        %398 = vmatprep.subr.bf16.mxu0 0
        %399 = vmatpush1.bf16.xpose.msra.mxu0 %v382
        %400 = vmatprep.subr.bf16.mxu0 0
        %401 = vmatpush2.bf16.xpose.msra.mxu0 0
        %402 = vmatprep.subr.bf16.mxu0 0
        %403 = vmatpush2.bf16.xpose.msra.mxu0 0
        %404 = vmatprep.subr.bf16.mxu0 0
        %405 = vmatpush2.bf16.xpose.msra.mxu0 0
        %406 = vmatprep.subr.bf16.mxu0 0
        %407 = vmatpush2.bf16.xpose.msra.mxu0 0
        %408 = vmatprep.subr.bf16.mxu0 0
        %409 = vmatpush2.bf16.xpose.msra.mxu0 0
        %410 = vmatprep.subr.bf16.mxu0 0
        %411 = vmatpush2.bf16.xpose.msra.mxu0 0
        %412 = vmatprep.subr.bf16.mxu0 0
        %413 = vmatpush2.bf16.xpose.msra.mxu0 0
        %414 = vmatprep.subr.bf16.mxu0 0
        %415 = vmatpush2.bf16.xpose.msra.mxu0 0
        %416 = vmatprep.mubr.bf16.mxu0 0
        %417 = vmatmul.mubr.bf16.gmra.mxu0 %v379
        %v418 = vpop.f32.mrf.mxu0
        %v419 = vadd.f32 0.0, %v418
        %v420 = vpop.f32.mrf.mxu0
        %v421 = vpop.f32.mrf.mxu0
        %v422 = vpop.f32.mrf.mxu0
        %423 = vdwg.mxu0
        %v424 = vld [vmem:[#allocation2] sm:$0xff]
        %vm425 = vcmask 64512
        %v426 = vsel %vm425, %v419, -inf
        %427 = vmax.xlane.f32.xlu0 %v426
        %v428 = vpop.xlane.xlu0 %427
        %v429 = vmax.f32 %v424, %v428
        %v430 = vsub.f32 %v424, %v429
        %v431 = vmul.f32 %v430, 1.442695
        %v432 = vpow.pop %v431
        %434 = vset.pattern.permute.xlu0 0
        %435 = vperm.xlu0 %434, %v429
        %v436 = vpop.permute.xlu0 %435
        %v438 = vsub.f32 %v419, %v436
        %v439 = vmul.f32 %v438, 1.442695
        %v440 = vpow.pop %v439
        %v441 = vld [vmem:[#allocation3] sm:$0xff]
        %v442 = vmul.f32 %v432, %v441
        %v443 = vsel %vm425, %v440, 0.0
        %444 = vadd.xlane.f32.xlu0 %v443
        %v445 = vpop.xlane.xlu0 %444
        %v446 = vadd.f32 %v442, %v445
        %vm447 = vcmask 7168
        %448 = vst.msk [vmem:[#allocation3] sm:$0xff] %vm447, %v446
        %v449 = vld [vmem:[#allocation4] sm:$0xff]
        %451 = vset.pattern.permute.xlu0 0
        %452 = vperm.xlu0 %451, %v432
        %v453 = vpop.permute.xlu0 %452
        %v455 = vmul.f32 %v453, %v449
        %v456 = vpack.c.bf16 %v440, %v440
        %v457 = vld [vmem:[%s343] sm:$0xff]
        %v458 = vpack.c.bf16 %v457, %v457
        %v460 = vsel %vm425, %v456, 0
        %vm462 = vcmask 1043456
        %v464 = vsel %vm462, %v458, 0
        %466 = vmatprep.subr.bf16.mxu0 0
        %467 = vmatpush1.bf16.msra.mxu0 0
        %468 = vmatprep.subr.bf16.mxu0 0
        %469 = vmatpush1.bf16.msra.mxu0 0
        %470 = vmatprep.subr.bf16.mxu0 0
        %471 = vmatpush1.bf16.msra.mxu0 0
        %472 = vmatprep.subr.bf16.mxu0 0
        %473 = vmatpush1.bf16.msra.mxu0 0
        %474 = vmatprep.subr.bf16.mxu0 0
        %475 = vmatpush1.bf16.msra.mxu0 0
        %476 = vmatprep.subr.bf16.mxu0 0
        %477 = vmatpush1.bf16.msra.mxu0 0
        %478 = vmatprep.subr.bf16.mxu0 0
        %479 = vmatpush1.bf16.msra.mxu0 0
        %480 = vmatprep.subr.bf16.mxu0 0
        %481 = vmatpush1.bf16.msra.mxu0 %v464
        %482 = vmatprep.subr.bf16.mxu0 0
        %483 = vmatpush2.bf16.msra.mxu0 0
        %484 = vmatprep.subr.bf16.mxu0 0
        %485 = vmatpush2.bf16.msra.mxu0 0
        %486 = vmatprep.subr.bf16.mxu0 0
        %487 = vmatpush2.bf16.msra.mxu0 0
        %488 = vmatprep.subr.bf16.mxu0 0
        %489 = vmatpush2.bf16.msra.mxu0 0
        %490 = vmatprep.subr.bf16.mxu0 0
        %491 = vmatpush2.bf16.msra.mxu0 0
        %492 = vmatprep.subr.bf16.mxu0 0
        %493 = vmatpush2.bf16.msra.mxu0 0
        %494 = vmatprep.subr.bf16.mxu0 0
        %495 = vmatpush2.bf16.msra.mxu0 0
        %496 = vmatprep.subr.bf16.mxu0 0
        %497 = vmatpush2.bf16.msra.mxu0 0
        %498 = vmatprep.mubr.bf16.mxu0 0
        %499 = vmatmul.mubr.bf16.gmra.mxu0 %v460
        %v500 = vpop.f32.mrf.mxu0
        %v501 = vadd.f32 0.0, %v500
        %v502 = vpop.f32.mrf.mxu0
        %v503 = vpop.f32.mrf.mxu0
        %v504 = vpop.f32.mrf.mxu0
        %505 = vdwg.mxu0
        %v506 = vadd.f32 %v455, %v501
        %507 = vst.msk [vmem:[#allocation4] sm:$0xff] %vm377, %v506
        %508 = vst.msk [vmem:[#allocation2] sm:$0xff] %vm447, %v429
      $region40: #{causal_self_attention.4} parent=31 // pred_fallthru
        _
      %p509 = scmp.eq.s32.totalorder %s23, %s22
      // Predicated region
      $region41: #{causal_self_attention.4} parent=31 // pred_check
        %p510 = pneg %p509
      $region42: #{causal_self_attention.4} parent=31 // pred_check_branch
        %512 = sbr.rel (%p510) target = $region44
      $region43: #{causal_self_attention.4} parent=31 // pred_region
        %v513 = vld [vmem:[%s313] sm:$0xff]
        %v514 = vmul.f32 %v513, 0.125
        %v515 = vpack.c.bf16 %v514, %v514
        %v516 = vld [vmem:[%s327] sm:$0xff]
        %v517 = vpack.c.bf16 %v516, %v516
        %vm518 = vcmask 523264
        %v520 = vsel %vm518, %v515, 0
        %v523 = vsel %vm518, %v517, 0
        %525 = vmatprep.subr.bf16.mxu0 0
        %526 = vmatpush1.bf16.xpose.msra.mxu0 0
        %527 = vmatprep.subr.bf16.mxu0 0
        %528 = vmatpush1.bf16.xpose.msra.mxu0 0
        %529 = vmatprep.subr.bf16.mxu0 0
        %530 = vmatpush1.bf16.xpose.msra.mxu0 0
        %531 = vmatprep.subr.bf16.mxu0 0
        %532 = vmatpush1.bf16.xpose.msra.mxu0 0
        %533 = vmatprep.subr.bf16.mxu0 0
        %534 = vmatpush1.bf16.xpose.msra.mxu0 0
        %535 = vmatprep.subr.bf16.mxu0 0
        %536 = vmatpush1.bf16.xpose.msra.mxu0 0
        %537 = vmatprep.subr.bf16.mxu0 0
        %538 = vmatpush1.bf16.xpose.msra.mxu0 0
        %539 = vmatprep.subr.bf16.mxu0 0
        %540 = vmatpush1.bf16.xpose.msra.mxu0 %v523
        %541 = vmatprep.subr.bf16.mxu0 0
        %542 = vmatpush2.bf16.xpose.msra.mxu0 0
        %543 = vmatprep.subr.bf16.mxu0 0
        %544 = vmatpush2.bf16.xpose.msra.mxu0 0
        %545 = vmatprep.subr.bf16.mxu0 0
        %546 = vmatpush2.bf16.xpose.msra.mxu0 0
        %547 = vmatprep.subr.bf16.mxu0 0
        %548 = vmatpush2.bf16.xpose.msra.mxu0 0
        %549 = vmatprep.subr.bf16.mxu0 0
        %550 = vmatpush2.bf16.xpose.msra.mxu0 0
        %551 = vmatprep.subr.bf16.mxu0 0
        %552 = vmatpush2.bf16.xpose.msra.mxu0 0
        %553 = vmatprep.subr.bf16.mxu0 0
        %554 = vmatpush2.bf16.xpose.msra.mxu0 0
        %555 = vmatprep.subr.bf16.mxu0 0
        %556 = vmatpush2.bf16.xpose.msra.mxu0 0
        %557 = vmatprep.mubr.bf16.mxu0 0
        %558 = vmatmul.mubr.bf16.gmra.mxu0 %v520
        %v559 = vpop.f32.mrf.mxu0
        %v560 = vadd.f32 0.0, %v559
        %v561 = vpop.f32.mrf.mxu0
        %v562 = vpop.f32.mrf.mxu0
        %v563 = vpop.f32.mrf.mxu0
        %564 = vdwg.mxu0
        %s565 = smul.u32 %s22, 8
        %v566 = vlaneseq
        %v567 = vshrl.u32 %v566, 7
        %v568 = vstv %s565
        %v569 = vadd.s32 %v568, %v567
        %s570 = smul.u32 %s23, 8
        %v571 = vlaneseq
        %v572 = vand.u32 %v571, 127
        %v573 = vstv %s570
        %v574 = vadd.s32 %v573, %v572
        %vm575 = vcmp.ge.s32.totalorder %v569, %v574
        %v576 = vsel %vm575, %v560, -1e+30
        %v577 = vld [vmem:[#allocation2] sm:$0xff]
        %vm578 = vcmask 64512
        %v579 = vsel %vm578, %v576, -inf
        %580 = vmax.xlane.f32.xlu0 %v579
        %v581 = vpop.xlane.xlu0 %580
        %v582 = vmax.f32 %v577, %v581
        %v583 = vsub.f32 %v577, %v582
        %v584 = vmul.f32 %v583, 1.442695
        %v585 = vpow.pop %v584
        %587 = vset.pattern.permute.xlu0 0
        %588 = vperm.xlu0 %587, %v582
        %v589 = vpop.permute.xlu0 %588
        %v591 = vsub.f32 %v576, %v589
        %v592 = vmul.f32 %v591, 1.442695
        %v593 = vpow.pop %v592
        %v594 = vld [vmem:[#allocation3] sm:$0xff]
        %v595 = vmul.f32 %v585, %v594
        %v596 = vsel %vm578, %v593, 0.0
        %597 = vadd.xlane.f32.xlu0 %v596
        %v598 = vpop.xlane.xlu0 %597
        %v599 = vadd.f32 %v595, %v598
        %vm600 = vcmask 7168
        %601 = vst.msk [vmem:[#allocation3] sm:$0xff] %vm600, %v599
        %v602 = vld [vmem:[#allocation4] sm:$0xff]
        %604 = vset.pattern.permute.xlu0 0
        %605 = vperm.xlu0 %604, %v585
        %v606 = vpop.permute.xlu0 %605
        %v608 = vmul.f32 %v606, %v602
        %v609 = vpack.c.bf16 %v593, %v593
        %v610 = vld [vmem:[%s343] sm:$0xff]
        %v611 = vpack.c.bf16 %v610, %v610
        %v613 = vsel %vm578, %v609, 0
        %vm615 = vcmask 1043456
        %v617 = vsel %vm615, %v611, 0
        %619 = vmatprep.subr.bf16.mxu0 0
        %620 = vmatpush1.bf16.msra.mxu0 0
        %621 = vmatprep.subr.bf16.mxu0 0
        %622 = vmatpush1.bf16.msra.mxu0 0
        %623 = vmatprep.subr.bf16.mxu0 0
        %624 = vmatpush1.bf16.msra.mxu0 0
        %625 = vmatprep.subr.bf16.mxu0 0
        %626 = vmatpush1.bf16.msra.mxu0 0
        %627 = vmatprep.subr.bf16.mxu0 0
        %628 = vmatpush1.bf16.msra.mxu0 0
        %629 = vmatprep.subr.bf16.mxu0 0
        %630 = vmatpush1.bf16.msra.mxu0 0
        %631 = vmatprep.subr.bf16.mxu0 0
        %632 = vmatpush1.bf16.msra.mxu0 0
        %633 = vmatprep.subr.bf16.mxu0 0
        %634 = vmatpush1.bf16.msra.mxu0 %v617
        %635 = vmatprep.subr.bf16.mxu0 0
        %636 = vmatpush2.bf16.msra.mxu0 0
        %637 = vmatprep.subr.bf16.mxu0 0
        %638 = vmatpush2.bf16.msra.mxu0 0
        %639 = vmatprep.subr.bf16.mxu0 0
        %640 = vmatpush2.bf16.msra.mxu0 0
        %641 = vmatprep.subr.bf16.mxu0 0
        %642 = vmatpush2.bf16.msra.mxu0 0
        %643 = vmatprep.subr.bf16.mxu0 0
        %644 = vmatpush2.bf16.msra.mxu0 0
        %645 = vmatprep.subr.bf16.mxu0 0
        %646 = vmatpush2.bf16.msra.mxu0 0
        %647 = vmatprep.subr.bf16.mxu0 0
        %648 = vmatpush2.bf16.msra.mxu0 0
        %649 = vmatprep.subr.bf16.mxu0 0
        %650 = vmatpush2.bf16.msra.mxu0 0
        %651 = vmatprep.mubr.bf16.mxu0 0
        %652 = vmatmul.mubr.bf16.gmra.mxu0 %v613
        %v653 = vpop.f32.mrf.mxu0
        %v654 = vadd.f32 0.0, %v653
        %v655 = vpop.f32.mrf.mxu0
        %v656 = vpop.f32.mrf.mxu0
        %v657 = vpop.f32.mrf.mxu0
        %658 = vdwg.mxu0
        %v659 = vadd.f32 %v608, %v654
        %660 = vst.msk [vmem:[#allocation4] sm:$0xff] %vm518, %v659
        %661 = vst.msk [vmem:[#allocation2] sm:$0xff] %vm600, %v582
      $region44: #{causal_self_attention.4} parent=31 // pred_fallthru
        _
      %p662 = scmp.eq.s32.totalorder %s23, 1
      // Predicated region
      $region45: #{causal_self_attention.4} parent=31 // pred_check
        %p663 = pneg %p662
      $region46: #{causal_self_attention.4} parent=31 // pred_check_branch
        %665 = sbr.rel (%p663) target = $region48
      $region47: #{causal_self_attention.4} parent=31 // pred_region
        %v666 = vld [vmem:[#allocation3] sm:$0xff]
        %v667 = vrcp.pop %v666
        %v668 = vld [vmem:[#allocation4] sm:$0xff]
        %670 = vset.pattern.permute.xlu0 0
        %671 = vperm.xlu0 %670, %v667
        %v672 = vpop.permute.xlu0 %671
        %v674 = vmul.f32 %v668, %v672
        %vm675 = vcmask 523264
        %676 = vst.msk [vmem:[%s357] sm:$0xff] %vm675, %v674
      $region48: #{causal_self_attention.4} parent=31 // pred_fallthru
        _
      %p677 = scmp.lt.s32.totalorder %s20, 1
      %s678 = scalar_select %p677, %s20, 1
      %p679 = scmp.lt.s32.totalorder %s21, 3
      %s680 = scalar_select %p679, %s21, 3
      %p681 = scmp.lt.s32.totalorder %s22, 1
      %s682 = scalar_select %p681, %s22, 1
      %s683 = smul.addr %s680, 2
      %s684 = sadd.s32 %s682, %s683
      %s685 = smul.addr %s678, 8
      %s686 = sadd.s32 %s684, %s685
      %s687 = smul.addr %s686, 8
      %s688 = scalar_lea.vmem %s3, %s687
      // Predicated region
      $region49: #{causal_self_attention.4} parent=31 // pred_check
        %p689 = pneg %p160
      $region50: #{causal_self_attention.4} parent=31 // pred_check_branch
        %691 = sbr.rel (%p689) target = $region52
      $region51: #{causal_self_attention.4} parent=31 // pred_region
        _
      $region52: #{causal_self_attention.4} parent=31 // pred_fallthru
        _
    $region32: #{causal_self_attention.4} parent=5 // pred_fallthru
      _
    %p692 = scmp.le.s32.totalorder 2, %s9
    // Predicated region
    $region53: #{causal_self_attention.4} parent=5 // pred_check
      %p693 = pneg %p692
    $region54: #{causal_self_attention.4} parent=5 // pred_check_branch
      %695 = sbr.rel (%p693) target = $region56
    $region55: #{causal_self_attention.4} parent=5 // pred_region
      %s696 = ssub.s32 %s9, 2
      // Predicated region
      $region57: #{causal_self_attention.4} parent=55 // pred_check
        %p697 = pneg %p166
      $region58: #{causal_self_attention.4} parent=55 // pred_check_branch
        %699 = sbr.rel (%p697) target = $region60
      $region59: #{causal_self_attention.4} parent=55 // pred_region
        %p700 = scmp.lt.s32.totalorder %s24, 1
        %s701 = scalar_select %p700, %s24, 1
        %p702 = scmp.lt.s32.totalorder %s25, 3
        %s703 = scalar_select %p702, %s25, 3
        %p704 = scmp.lt.s32.totalorder %s26, 1
        %s705 = scalar_select %p704, %s26, 1
        %s706 = smul.addr %s703, 2
        %s707 = sadd.s32 %s705, %s706
        %s708 = smul.addr %s701, 8
        %s709 = sadd.s32 %s707, %s708
        %s710 = smul.addr %s709, 8
        %s711 = scalar_lea.vmem %s3, %s710
      $region60: #{causal_self_attention.4} parent=55 // pred_fallthru
        _
    $region56: #{causal_self_attention.4} parent=5 // pred_fallthru
      _
  $region6: #{causal_self_attention.4} parent=0 // loop_footer
    %s13 = sadd.s32 1, %s9
  $region7: #{causal_self_attention.4} parent=0 // loop_footer_branch
    %8 = sbr.rel target = $region3
  $region8: #{causal_self_attention.4} parent=0 // loop_exit
    _

</llo_original>
